<compile_context>
chip_gen: v5e
topology: v5e:2x2
jax: 0.10.0
libtpu: 0.0.40
codegen_flags: <defaults>
</compile_context>

<pallas_src>
import functools

import jax
import jax.numpy as jnp
from jax import lax
from jax.experimental import pallas as pl
from jax.experimental.pallas import tpu as pltpu

KSIZE = 7
PAD = 3
LANES = 128


def _fused_kernel(x_ref, w_ref, xc_ref, o_ref, ssum_ref, smax_ref,
                  *, W, HW, HWp, C, c_chunk):
    """Fused channel reduction + 7x7 conv + sigmoid (flat, lane-dense spatial).

    x_ref   : (n_tile, c_chunk, HW) input block.
    w_ref   : (98,) f32 in SMEM; [0:49] avg-path weights pre-scaled by 1/C,
              [49:98] max-path weights, row-major over (ky, kx).
    xc_ref  : (1, HWp) int32, x coordinate (p % W) of every flat position.
    o_ref   : (n_tile, 1, HWp) output block (x.dtype), written in the epilogue.
    ssum_ref/smax_ref : (n_tile, HWp) f32 resident channel-sum / channel-max.
    """
    c = pl.program_id(1)
    nc = pl.num_programs(1)
    f32 = jnp.float32

    # ---- streamed channel reduction (resident f32 accumulators) -----------
    def accumulate(psum, pmax):
        @pl.when(c == 0)
        def _():
            ssum_ref[:, :HW] = psum
            smax_ref[:, :HW] = pmax

        @pl.when(c > 0)
        def _():
            ssum_ref[:, :HW] = ssum_ref[:, :HW] + psum
            smax_ref[:, :HW] = jnp.maximum(smax_ref[:, :HW], pmax)

    rem = C % c_chunk
    if rem == 0:
        x = x_ref[...]
        accumulate(jnp.sum(x, axis=1, dtype=f32),
                   jnp.max(x, axis=1).astype(f32))
    else:
        # Only the last channel chunk is partial: mask only there.
        @pl.when(c < nc - 1)
        def _():
            x = x_ref[...]
            accumulate(jnp.sum(x, axis=1, dtype=f32),
                       jnp.max(x, axis=1).astype(f32))

        @pl.when(c == nc - 1)
        def _():
            x = x_ref[...]
            valid = (lax.broadcasted_iota(jnp.int32, (1, c_chunk, HW), 1)
                     < rem)
            xs = jnp.where(valid, x, jnp.zeros((), x.dtype))
            xm = jnp.where(valid, x, jnp.finfo(x.dtype).min)
            accumulate(jnp.sum(xs, axis=1, dtype=f32),
                       jnp.max(xm, axis=1).astype(f32))

    # ---- epilogue: 7x7 conv over (sum, max) + sigmoid, all lane-dense ------
    @pl.when(c == nc - 1)
    def _():
        s_sum = ssum_ref[...]                    # (n_tile, HWp) f32
        s_max = smax_ref[...]                    # (n_tile, HWp) f32
        xc = xc_ref[...]                         # (1, HWp) int32
        pos = lax.broadcasted_iota(jnp.int32, (1, HWp), 1)

        # 7 kx lane-rolls per stats channel (14 XLU rolls), row-boundary
        # (x) masked.  roll(v, (-dx) % HWp)[q] == v[q + dx] for in-range taps.
        a_sum, a_max = [], []
        for dxi in range(KSIZE):
            dx = dxi - PAD
            sh = (-dx) % HWp
            r_sum = pltpu.roll(s_sum, sh, 1) if sh else s_sum
            r_max = pltpu.roll(s_max, sh, 1) if sh else s_max
            if dx != 0:
                inb = jnp.logical_and(xc + dx >= 0, xc + dx < W)
                r_sum = jnp.where(inb, r_sum, 0.0)
                r_max = jnp.where(inb, r_max, 0.0)
            a_sum.append(r_sum)
            a_max.append(r_max)

        # 98 taps = SMEM scalar weight x lane-dense row, two independent
        # accumulators per ky; then one ky lane-roll (multiple of W) and a
        # y-boundary mask per ky (7 more rolls).
        out = jnp.zeros(s_sum.shape, f32)
        for dyi in range(KSIZE):
            dy = dyi - PAD
            p_avg = jnp.zeros(s_sum.shape, f32)
            p_max = jnp.zeros(s_sum.shape, f32)
            for dxi in range(KSIZE):
                p_avg = p_avg + w_ref[dyi * KSIZE + dxi] * a_sum[dxi]
                p_max = (p_max
                         + w_ref[KSIZE * KSIZE + dyi * KSIZE + dxi]
                         * a_max[dxi])
            p = p_avg + p_max
            shy = (-dy * W) % HWp
            pr = pltpu.roll(p, shy, 1) if shy else p
            oky = jnp.logical_and(pos + dy * W >= 0, pos + dy * W < HW)
            out = out + jnp.where(oky, pr, 0.0)

        # Lane-dense (HWp is a multiple of 128) unmasked store.
        o_ref[:, 0, :] = jax.nn.sigmoid(out).astype(o_ref.dtype)


def _pick_tiles(N, C, HW, HWp, itemsize, target):
    # Batch images per grid step to fill sublanes in the conv epilogue and
    # amortize per-step overhead, but keep >= 2 blocks over N (v7x megacore)
    # and keep the ~20 (n_tile, HWp) f32 epilogue temporaries within budget.
    n_tile = max(1, min(8, (N + 1) // 2))
    while n_tile > 1 and 20 * n_tile * HWp * 4 > target:
        n_tile //= 2
    # Channel chunk: biggest block near `target`, rounded to the dtype's
    # packed sublane tile (f32: 8, bf16/f16: 16, int8/fp8: 32).
    per_ch = max(1, n_tile * HW * itemsize)
    c_chunk = max(1, min(C, target // per_ch))
    pack = max(8, 32 // itemsize)
    if c_chunk < C:
        c_chunk = min(C, max(pack, (c_chunk // pack) * pack))
    return n_tile, c_chunk


@functools.partial(jax.jit, static_argnames=("block_target_bytes",))
def spatial_attention(x, weight, *, block_target_bytes=8 * 1024 * 1024):
    """sigmoid(conv2d(cat([mean_c(x), max_c(x)], 1), weight, padding=3))."""
    N, C, H, W = x.shape
    assert weight.shape == (1, 2, KSIZE, KSIZE), weight.shape
    assert jnp.issubdtype(x.dtype, jnp.floating), x.dtype

    HW = H * W
    HWp = pl.cdiv(HW, LANES) * LANES
    x3 = x.reshape(N, C, HW)                 # free: same row-major layout

    n_tile, c_chunk = _pick_tiles(N, C, HW, HWp, x.dtype.itemsize,
                                  block_target_bytes)
    nb = pl.cdiv(N, n_tile)
    nc = pl.cdiv(C, c_chunk)

    # Fold the 1/C of the mean into the avg-path weights (conv is linear).
    w_flat = jnp.concatenate(
        [(weight[0, 0] / C).reshape(-1), weight[0, 1].reshape(-1)]
    ).astype(jnp.float32)                    # (98,)
    # x coordinate of every flat position (for the kx boundary masks).
    xcoord = (jnp.arange(HWp, dtype=jnp.int32) % W).reshape(1, HWp)

    # Explicit VMEM budget: double-buffered input/output blocks + stats
    # scratch + conv-epilogue temporaries, clamped to [32, 48] MiB so it is
    # valid on v5e (16 MiB default scoped) and v7x (64 MiB physical).
    in_blk = n_tile * c_chunk * HW * x.dtype.itemsize
    out_blk = n_tile * HWp * x.dtype.itemsize
    est = 2 * in_blk + 2 * out_blk + 22 * n_tile * HWp * 4 + (2 << 20)
    vmem_limit = int(min(max(est, 32 << 20), 48 << 20))

    kern = functools.partial(_fused_kernel, W=W, HW=HW, HWp=HWp, C=C,
                             c_chunk=c_chunk)
    out_flat = pl.pallas_call(
        kern,
        out_shape=jax.ShapeDtypeStruct((N, 1, HWp), x.dtype),
        grid_spec=pltpu.PrefetchScalarGridSpec(
            num_scalar_prefetch=0,
            grid=(nb, nc),
            in_specs=[
                pl.BlockSpec((n_tile, c_chunk, HW), lambda n, c: (n, c, 0)),
                pl.BlockSpec(memory_space=pltpu.MemorySpace.SMEM),
                pl.BlockSpec((1, HWp), lambda n, c: (0, 0)),
            ],
            out_specs=pl.BlockSpec((n_tile, 1, HWp), lambda n, c: (n, 0, 0)),
            scratch_shapes=[pltpu.VMEM((n_tile, HWp), jnp.float32),
                            pltpu.VMEM((n_tile, HWp), jnp.float32)],
        ),
        compiler_params=pltpu.CompilerParams(
            dimension_semantics=("parallel", "arbitrary"),
            vmem_limit_bytes=vmem_limit),
    )(x3, w_flat, xcoord)

    return out_flat[:, :, :HW].reshape(N, 1, H, W)


def spatial_attention_ref(x, weight):
    """Pure-JAX reference (mirrors the PyTorch forward)."""
    avg = jnp.mean(x, axis=1, keepdims=True)
    mx = jnp.max(x, axis=1, keepdims=True)
    cat = jnp.concatenate([avg, mx], axis=1)
    out = lax.conv_general_dilated(
        cat, weight,
        window_strides=(1, 1),
        padding=((PAD, PAD), (PAD, PAD)),
        dimension_numbers=("NCHW", "OIHW", "NCHW"),
    )
    return jax.nn.sigmoid(out)


if __name__ == "__main__":
    key = jax.random.PRNGKey(0)
    kx_key, kw_key = jax.random.split(key)

    # Module-consistent small shapes: batch=2, channels=4, spatial=16.
    N, C, H, W = 2, 4, 16, 16
    x = jax.random.normal(kx_key, (N, C, H, W), dtype=jnp.float32)
    fan_in = 2 * KSIZE * KSIZE
    weight = (jax.random.normal(kw_key, (1, 2, KSIZE, KSIZE), dtype=jnp.float32)
              / jnp.sqrt(fan_in))

    out = jax.block_until_ready(spatial_attention(x, weight))
    ref = jax.block_until_ready(spatial_attention_ref(x, weight))
    assert out.shape == (N, 1, H, W)
    assert jnp.allclose(out, ref, atol=1e-5, rtol=1e-5), (
        f"max abs err = {jnp.max(jnp.abs(out - ref))}")

    # Second config: odd spatial size (H*W not a multiple of 128) and a tiny
    # block budget to exercise channel chunking + the partial-chunk mask path.
    N2, C2, H2, W2 = 2, 20, 7, 9
    x2 = jax.random.normal(kx_key, (N2, C2, H2, W2), dtype=jnp.float32)
    out2 = jax.block_until_ready(
        spatial_attention(x2, weight, block_target_bytes=4096))
    ref2 = jax.block_until_ready(spatial_attention_ref(x2, weight))
    assert out2.shape == (N2, 1, H2, W2)
    assert jnp.allclose(out2, ref2, atol=1e-5, rtol=1e-5), (
        f"max abs err = {jnp.max(jnp.abs(out2 - ref2))}")

    print("KERNEL_OK")
</pallas_src>

<mosaic_0001>
module attributes {stable_mosaic.version = 11 : i64} {
  func.func @_fused_kernel(%arg0: i32, %arg1: i32, %arg2: memref<1x4x256xf32, #tpu.memory_space<vmem>>, %arg3: memref<98xf32, #tpu.memory_space<smem>>, %arg4: memref<1x256xi32, #tpu.memory_space<vmem>>, %arg5: memref<1x1x256xf32, #tpu.memory_space<vmem>>, %arg6: memref<1x256xf32, #tpu.memory_space<vmem>>, %arg7: memref<1x256xf32, #tpu.memory_space<vmem>>) attributes {dimension_semantics = [#tpu.dimension_semantics<parallel>, #tpu.dimension_semantics<arbitrary>], iteration_bounds = array<i64: 2, 1>, scalar_prefetch = 0 : i64, scratch_operands = 2 : i64, tpu.core_type = #tpu.core_type<tc>, window_params = [{transform_indices = @transform_0, window_bounds = array<i64: 1, 4, 256>}, {transform_indices = @transform_1, window_bounds = array<i64: 98>}, {pipeline_mode = #tpu.pipeline_mode<synchronous>, transform_indices = @transform_2, window_bounds = array<i64: 1, 256>}, {transform_indices = @transform_3, window_bounds = array<i64: 1, 1, 256>}]} {
    %c0 = arith.constant 0 : index
    %c0_0 = arith.constant 0 : index
    %c0_1 = arith.constant 0 : index
    %0 = vector.load %arg2[%c0, %c0_0, %c0_1] : memref<1x4x256xf32, #tpu.memory_space<vmem>>, vector<1x4x256xf32>
    %cst = arith.constant dense<0.000000e+00> : vector<1x256xf32>
    %1 = vector.multi_reduction <add>, %0, %cst [1] : vector<1x4x256xf32> to vector<1x256xf32>
    %cst_2 = arith.constant dense<0xFF800000> : vector<1x256xf32>
    %2 = vector.multi_reduction <maximumf>, %0, %cst_2 [1] : vector<1x4x256xf32> to vector<1x256xf32>
    %c0_i32 = arith.constant 0 : i32
    %3 = arith.cmpi eq, %arg1, %c0_i32 : i32
    %4 = arith.extui %3 : i1 to i32
    %c0_i32_3 = arith.constant 0 : i32
    %5 = arith.cmpi ne, %4, %c0_i32_3 : i32
    scf.if %5 {
      %c0_8 = arith.constant 0 : index
      %c0_9 = arith.constant 0 : index
      %12 = vector.load %arg6[%c0_8, %c0_9] : memref<1x256xf32, #tpu.memory_space<vmem>>, vector<1x256xf32>
      tpu.vector_store %arg6[%c0_8, %c0_9], %1 {strides = array<i32>} : memref<1x256xf32, #tpu.memory_space<vmem>>, vector<1x256xf32>,
      %c0_10 = arith.constant 0 : index
      %c0_11 = arith.constant 0 : index
      %13 = vector.load %arg7[%c0_10, %c0_11] : memref<1x256xf32, #tpu.memory_space<vmem>>, vector<1x256xf32>
      tpu.vector_store %arg7[%c0_10, %c0_11], %2 {strides = array<i32>} : memref<1x256xf32, #tpu.memory_space<vmem>>, vector<1x256xf32>,
    } else {
    }
    %c0_i32_4 = arith.constant 0 : i32
    %6 = arith.cmpi sgt, %arg1, %c0_i32_4 : i32
    %7 = arith.extui %6 : i1 to i32
    %c0_i32_5 = arith.constant 0 : i32
    %8 = arith.cmpi ne, %7, %c0_i32_5 : i32
    scf.if %8 {
      %c0_8 = arith.constant 0 : index
      %c0_9 = arith.constant 0 : index
      %12 = vector.load %arg6[%c0_8, %c0_9] : memref<1x256xf32, #tpu.memory_space<vmem>>, vector<1x256xf32>
      %13 = arith.addf %12, %1 : vector<1x256xf32>
      %c0_10 = arith.constant 0 : index
      %c0_11 = arith.constant 0 : index
      %14 = vector.load %arg6[%c0_10, %c0_11] : memref<1x256xf32, #tpu.memory_space<vmem>>, vector<1x256xf32>
      tpu.vector_store %arg6[%c0_10, %c0_11], %13 {strides = array<i32>} : memref<1x256xf32, #tpu.memory_space<vmem>>, vector<1x256xf32>,
      %c0_12 = arith.constant 0 : index
      %c0_13 = arith.constant 0 : index
      %15 = vector.load %arg7[%c0_12, %c0_13] : memref<1x256xf32, #tpu.memory_space<vmem>>, vector<1x256xf32>
      %16 = arith.maximumf %15, %2 : vector<1x256xf32>
      %c0_14 = arith.constant 0 : index
      %c0_15 = arith.constant 0 : index
      %17 = vector.load %arg7[%c0_14, %c0_15] : memref<1x256xf32, #tpu.memory_space<vmem>>, vector<1x256xf32>
      tpu.vector_store %arg7[%c0_14, %c0_15], %16 {strides = array<i32>} : memref<1x256xf32, #tpu.memory_space<vmem>>, vector<1x256xf32>,
    } else {
    }
    %c0_i32_6 = arith.constant 0 : i32
    %9 = arith.cmpi eq, %arg1, %c0_i32_6 : i32
    %10 = arith.extui %9 : i1 to i32
    %c0_i32_7 = arith.constant 0 : i32
    %11 = arith.cmpi ne, %10, %c0_i32_7 : i32
    scf.if %11 {
      %c0_8 = arith.constant 0 : index
      %c0_9 = arith.constant 0 : index
      %12 = vector.load %arg6[%c0_8, %c0_9] : memref<1x256xf32, #tpu.memory_space<vmem>>, vector<1x256xf32>
      %c0_10 = arith.constant 0 : index
      %c0_11 = arith.constant 0 : index
      %13 = vector.load %arg7[%c0_10, %c0_11] : memref<1x256xf32, #tpu.memory_space<vmem>>, vector<1x256xf32>
      %c0_12 = arith.constant 0 : index
      %c0_13 = arith.constant 0 : index
      %14 = vector.load %arg4[%c0_12, %c0_13] : memref<1x256xi32, #tpu.memory_space<vmem>>, vector<1x256xi32>
      %15 = tpu.iota {dimensions = array<i32: 1>} : vector<1x256xi32>
      %c3_i32 = arith.constant 3 : i32
      %16 = tpu.dynamic_rotate %12 by %c3_i32 dim 1 : vector<1x256xf32>, i32 -> vector<1x256xf32>
      %c3_i32_14 = arith.constant 3 : i32
      %17 = tpu.dynamic_rotate %13 by %c3_i32_14 dim 1 : vector<1x256xf32>, i32 -> vector<1x256xf32>
      %c-3_i32 = arith.constant -3 : i32
      %18 = vector.broadcast %c-3_i32 : i32 to vector<1x256xi32>
      %19 = arith.addi %14, %18 : vector<1x256xi32>
      %c0_i32_15 = arith.constant 0 : i32
      %20 = vector.broadcast %c0_i32_15 : i32 to vector<1x256xi32>
      %21 = arith.cmpi sge, %19, %20 : vector<1x256xi32>
      %c-3_i32_16 = arith.constant -3 : i32
      %22 = vector.broadcast %c-3_i32_16 : i32 to vector<1x256xi32>
      %23 = arith.addi %14, %22 : vector<1x256xi32>
      %c16_i32 = arith.constant 16 : i32
      %24 = vector.broadcast %c16_i32 : i32 to vector<1x256xi32>
      %25 = arith.cmpi slt, %23, %24 : vector<1x256xi32>
      %26 = arith.andi %21, %25 : vector<1x256xi1>
      %cst_17 = arith.constant 0.000000e+00 : f32
      %27 = vector.broadcast %cst_17 : f32 to vector<1x256xf32>
      %28 = arith.select %26, %16, %27 : vector<1x256xi1>, vector<1x256xf32>
      %cst_18 = arith.constant 0.000000e+00 : f32
      %29 = vector.broadcast %cst_18 : f32 to vector<1x256xf32>
      %30 = arith.select %26, %17, %29 : vector<1x256xi1>, vector<1x256xf32>
      %c2_i32 = arith.constant 2 : i32
      %31 = tpu.dynamic_rotate %12 by %c2_i32 dim 1 : vector<1x256xf32>, i32 -> vector<1x256xf32>
      %c2_i32_19 = arith.constant 2 : i32
      %32 = tpu.dynamic_rotate %13 by %c2_i32_19 dim 1 : vector<1x256xf32>, i32 -> vector<1x256xf32>
      %c-2_i32 = arith.constant -2 : i32
      %33 = vector.broadcast %c-2_i32 : i32 to vector<1x256xi32>
      %34 = arith.addi %14, %33 : vector<1x256xi32>
      %c0_i32_20 = arith.constant 0 : i32
      %35 = vector.broadcast %c0_i32_20 : i32 to vector<1x256xi32>
      %36 = arith.cmpi sge, %34, %35 : vector<1x256xi32>
      %c-2_i32_21 = arith.constant -2 : i32
      %37 = vector.broadcast %c-2_i32_21 : i32 to vector<1x256xi32>
      %38 = arith.addi %14, %37 : vector<1x256xi32>
      %c16_i32_22 = arith.constant 16 : i32
      %39 = vector.broadcast %c16_i32_22 : i32 to vector<1x256xi32>
      %40 = arith.cmpi slt, %38, %39 : vector<1x256xi32>
      %41 = arith.andi %36, %40 : vector<1x256xi1>
      %cst_23 = arith.constant 0.000000e+00 : f32
      %42 = vector.broadcast %cst_23 : f32 to vector<1x256xf32>
      %43 = arith.select %41, %31, %42 : vector<1x256xi1>, vector<1x256xf32>
      %cst_24 = arith.constant 0.000000e+00 : f32
      %44 = vector.broadcast %cst_24 : f32 to vector<1x256xf32>
      %45 = arith.select %41, %32, %44 : vector<1x256xi1>, vector<1x256xf32>
      %c1_i32 = arith.constant 1 : i32
      %46 = tpu.dynamic_rotate %12 by %c1_i32 dim 1 : vector<1x256xf32>, i32 -> vector<1x256xf32>
      %c1_i32_25 = arith.constant 1 : i32
      %47 = tpu.dynamic_rotate %13 by %c1_i32_25 dim 1 : vector<1x256xf32>, i32 -> vector<1x256xf32>
      %c-1_i32 = arith.constant -1 : i32
      %48 = vector.broadcast %c-1_i32 : i32 to vector<1x256xi32>
      %49 = arith.addi %14, %48 : vector<1x256xi32>
      %c0_i32_26 = arith.constant 0 : i32
      %50 = vector.broadcast %c0_i32_26 : i32 to vector<1x256xi32>
      %51 = arith.cmpi sge, %49, %50 : vector<1x256xi32>
      %c-1_i32_27 = arith.constant -1 : i32
      %52 = vector.broadcast %c-1_i32_27 : i32 to vector<1x256xi32>
      %53 = arith.addi %14, %52 : vector<1x256xi32>
      %c16_i32_28 = arith.constant 16 : i32
      %54 = vector.broadcast %c16_i32_28 : i32 to vector<1x256xi32>
      %55 = arith.cmpi slt, %53, %54 : vector<1x256xi32>
      %56 = arith.andi %51, %55 : vector<1x256xi1>
      %cst_29 = arith.constant 0.000000e+00 : f32
      %57 = vector.broadcast %cst_29 : f32 to vector<1x256xf32>
      %58 = arith.select %56, %46, %57 : vector<1x256xi1>, vector<1x256xf32>
      %cst_30 = arith.constant 0.000000e+00 : f32
      %59 = vector.broadcast %cst_30 : f32 to vector<1x256xf32>
      %60 = arith.select %56, %47, %59 : vector<1x256xi1>, vector<1x256xf32>
      %c255_i32 = arith.constant 255 : i32
      %61 = tpu.dynamic_rotate %12 by %c255_i32 dim 1 : vector<1x256xf32>, i32 -> vector<1x256xf32>
      %c255_i32_31 = arith.constant 255 : i32
      %62 = tpu.dynamic_rotate %13 by %c255_i32_31 dim 1 : vector<1x256xf32>, i32 -> vector<1x256xf32>
      %c1_i32_32 = arith.constant 1 : i32
      %63 = vector.broadcast %c1_i32_32 : i32 to vector<1x256xi32>
      %64 = arith.addi %14, %63 : vector<1x256xi32>
      %c0_i32_33 = arith.constant 0 : i32
      %65 = vector.broadcast %c0_i32_33 : i32 to vector<1x256xi32>
      %66 = arith.cmpi sge, %64, %65 : vector<1x256xi32>
      %c1_i32_34 = arith.constant 1 : i32
      %67 = vector.broadcast %c1_i32_34 : i32 to vector<1x256xi32>
      %68 = arith.addi %14, %67 : vector<1x256xi32>
      %c16_i32_35 = arith.constant 16 : i32
      %69 = vector.broadcast %c16_i32_35 : i32 to vector<1x256xi32>
      %70 = arith.cmpi slt, %68, %69 : vector<1x256xi32>
      %71 = arith.andi %66, %70 : vector<1x256xi1>
      %cst_36 = arith.constant 0.000000e+00 : f32
      %72 = vector.broadcast %cst_36 : f32 to vector<1x256xf32>
      %73 = arith.select %71, %61, %72 : vector<1x256xi1>, vector<1x256xf32>
      %cst_37 = arith.constant 0.000000e+00 : f32
      %74 = vector.broadcast %cst_37 : f32 to vector<1x256xf32>
      %75 = arith.select %71, %62, %74 : vector<1x256xi1>, vector<1x256xf32>
      %c254_i32 = arith.constant 254 : i32
      %76 = tpu.dynamic_rotate %12 by %c254_i32 dim 1 : vector<1x256xf32>, i32 -> vector<1x256xf32>
      %c254_i32_38 = arith.constant 254 : i32
      %77 = tpu.dynamic_rotate %13 by %c254_i32_38 dim 1 : vector<1x256xf32>, i32 -> vector<1x256xf32>
      %c2_i32_39 = arith.constant 2 : i32
      %78 = vector.broadcast %c2_i32_39 : i32 to vector<1x256xi32>
      %79 = arith.addi %14, %78 : vector<1x256xi32>
      %c0_i32_40 = arith.constant 0 : i32
      %80 = vector.broadcast %c0_i32_40 : i32 to vector<1x256xi32>
      %81 = arith.cmpi sge, %79, %80 : vector<1x256xi32>
      %c2_i32_41 = arith.constant 2 : i32
      %82 = vector.broadcast %c2_i32_41 : i32 to vector<1x256xi32>
      %83 = arith.addi %14, %82 : vector<1x256xi32>
      %c16_i32_42 = arith.constant 16 : i32
      %84 = vector.broadcast %c16_i32_42 : i32 to vector<1x256xi32>
      %85 = arith.cmpi slt, %83, %84 : vector<1x256xi32>
      %86 = arith.andi %81, %85 : vector<1x256xi1>
      %cst_43 = arith.constant 0.000000e+00 : f32
      %87 = vector.broadcast %cst_43 : f32 to vector<1x256xf32>
      %88 = arith.select %86, %76, %87 : vector<1x256xi1>, vector<1x256xf32>
      %cst_44 = arith.constant 0.000000e+00 : f32
      %89 = vector.broadcast %cst_44 : f32 to vector<1x256xf32>
      %90 = arith.select %86, %77, %89 : vector<1x256xi1>, vector<1x256xf32>
      %c253_i32 = arith.constant 253 : i32
      %91 = tpu.dynamic_rotate %12 by %c253_i32 dim 1 : vector<1x256xf32>, i32 -> vector<1x256xf32>
      %c253_i32_45 = arith.constant 253 : i32
      %92 = tpu.dynamic_rotate %13 by %c253_i32_45 dim 1 : vector<1x256xf32>, i32 -> vector<1x256xf32>
      %c3_i32_46 = arith.constant 3 : i32
      %93 = vector.broadcast %c3_i32_46 : i32 to vector<1x256xi32>
      %94 = arith.addi %14, %93 : vector<1x256xi32>
      %c0_i32_47 = arith.constant 0 : i32
      %95 = vector.broadcast %c0_i32_47 : i32 to vector<1x256xi32>
      %96 = arith.cmpi sge, %94, %95 : vector<1x256xi32>
      %c3_i32_48 = arith.constant 3 : i32
      %97 = vector.broadcast %c3_i32_48 : i32 to vector<1x256xi32>
      %98 = arith.addi %14, %97 : vector<1x256xi32>
      %c16_i32_49 = arith.constant 16 : i32
      %99 = vector.broadcast %c16_i32_49 : i32 to vector<1x256xi32>
      %100 = arith.cmpi slt, %98, %99 : vector<1x256xi32>
      %101 = arith.andi %96, %100 : vector<1x256xi1>
      %cst_50 = arith.constant 0.000000e+00 : f32
      %102 = vector.broadcast %cst_50 : f32 to vector<1x256xf32>
      %103 = arith.select %101, %91, %102 : vector<1x256xi1>, vector<1x256xf32>
      %cst_51 = arith.constant 0.000000e+00 : f32
      %104 = vector.broadcast %cst_51 : f32 to vector<1x256xf32>
      %105 = arith.select %101, %92, %104 : vector<1x256xi1>, vector<1x256xf32>
      %cst_52 = arith.constant 0.000000e+00 : f32
      %106 = vector.broadcast %cst_52 : f32 to vector<1x256xf32>
      %cst_53 = arith.constant 0.000000e+00 : f32
      %107 = vector.broadcast %cst_53 : f32 to vector<1x256xf32>
      %cst_54 = arith.constant 0.000000e+00 : f32
      %108 = vector.broadcast %cst_54 : f32 to vector<1x256xf32>
      %c0_55 = arith.constant 0 : index
      %109 = memref.load %arg3[%c0_55] : memref<98xf32, #tpu.memory_space<smem>>
      %110 = vector.broadcast %109 : f32 to vector<1x256xf32>
      %111 = arith.mulf %110, %28 : vector<1x256xf32>
      %112 = arith.addf %107, %111 : vector<1x256xf32>
      %c49 = arith.constant 49 : index
      %113 = memref.load %arg3[%c49] : memref<98xf32, #tpu.memory_space<smem>>
      %114 = vector.broadcast %113 : f32 to vector<1x256xf32>
      %115 = arith.mulf %114, %30 : vector<1x256xf32>
      %116 = arith.addf %108, %115 : vector<1x256xf32>
      %c1 = arith.constant 1 : index
      %117 = memref.load %arg3[%c1] : memref<98xf32, #tpu.memory_space<smem>>
      %118 = vector.broadcast %117 : f32 to vector<1x256xf32>
      %119 = arith.mulf %118, %43 : vector<1x256xf32>
      %120 = arith.addf %112, %119 : vector<1x256xf32>
      %c50 = arith.constant 50 : index
      %121 = memref.load %arg3[%c50] : memref<98xf32, #tpu.memory_space<smem>>
      %122 = vector.broadcast %121 : f32 to vector<1x256xf32>
      %123 = arith.mulf %122, %45 : vector<1x256xf32>
      %124 = arith.addf %116, %123 : vector<1x256xf32>
      %c2 = arith.constant 2 : index
      %125 = memref.load %arg3[%c2] : memref<98xf32, #tpu.memory_space<smem>>
      %126 = vector.broadcast %125 : f32 to vector<1x256xf32>
      %127 = arith.mulf %126, %58 : vector<1x256xf32>
      %128 = arith.addf %120, %127 : vector<1x256xf32>
      %c51 = arith.constant 51 : index
      %129 = memref.load %arg3[%c51] : memref<98xf32, #tpu.memory_space<smem>>
      %130 = vector.broadcast %129 : f32 to vector<1x256xf32>
      %131 = arith.mulf %130, %60 : vector<1x256xf32>
      %132 = arith.addf %124, %131 : vector<1x256xf32>
      %c3 = arith.constant 3 : index
      %133 = memref.load %arg3[%c3] : memref<98xf32, #tpu.memory_space<smem>>
      %134 = vector.broadcast %133 : f32 to vector<1x256xf32>
      %135 = arith.mulf %134, %12 : vector<1x256xf32>
      %136 = arith.addf %128, %135 : vector<1x256xf32>
      %c52 = arith.constant 52 : index
      %137 = memref.load %arg3[%c52] : memref<98xf32, #tpu.memory_space<smem>>
      %138 = vector.broadcast %137 : f32 to vector<1x256xf32>
      %139 = arith.mulf %138, %13 : vector<1x256xf32>
      %140 = arith.addf %132, %139 : vector<1x256xf32>
      %c4 = arith.constant 4 : index
      %141 = memref.load %arg3[%c4] : memref<98xf32, #tpu.memory_space<smem>>
      %142 = vector.broadcast %141 : f32 to vector<1x256xf32>
      %143 = arith.mulf %142, %73 : vector<1x256xf32>
      %144 = arith.addf %136, %143 : vector<1x256xf32>
      %c53 = arith.constant 53 : index
      %145 = memref.load %arg3[%c53] : memref<98xf32, #tpu.memory_space<smem>>
      %146 = vector.broadcast %145 : f32 to vector<1x256xf32>
      %147 = arith.mulf %146, %75 : vector<1x256xf32>
      %148 = arith.addf %140, %147 : vector<1x256xf32>
      %c5 = arith.constant 5 : index
      %149 = memref.load %arg3[%c5] : memref<98xf32, #tpu.memory_space<smem>>
      %150 = vector.broadcast %149 : f32 to vector<1x256xf32>
      %151 = arith.mulf %150, %88 : vector<1x256xf32>
      %152 = arith.addf %144, %151 : vector<1x256xf32>
      %c54 = arith.constant 54 : index
      %153 = memref.load %arg3[%c54] : memref<98xf32, #tpu.memory_space<smem>>
      %154 = vector.broadcast %153 : f32 to vector<1x256xf32>
      %155 = arith.mulf %154, %90 : vector<1x256xf32>
      %156 = arith.addf %148, %155 : vector<1x256xf32>
      %c6 = arith.constant 6 : index
      %157 = memref.load %arg3[%c6] : memref<98xf32, #tpu.memory_space<smem>>
      %158 = vector.broadcast %157 : f32 to vector<1x256xf32>
      %159 = arith.mulf %158, %103 : vector<1x256xf32>
      %160 = arith.addf %152, %159 : vector<1x256xf32>
      %c55 = arith.constant 55 : index
      %161 = memref.load %arg3[%c55] : memref<98xf32, #tpu.memory_space<smem>>
      %162 = vector.broadcast %161 : f32 to vector<1x256xf32>
      %163 = arith.mulf %162, %105 : vector<1x256xf32>
      %164 = arith.addf %156, %163 : vector<1x256xf32>
      %165 = arith.addf %160, %164 : vector<1x256xf32>
      %c48_i32 = arith.constant 48 : i32
      %166 = tpu.dynamic_rotate %165 by %c48_i32 dim 1 : vector<1x256xf32>, i32 -> vector<1x256xf32>
      %c-48_i32 = arith.constant -48 : i32
      %167 = vector.broadcast %c-48_i32 : i32 to vector<1x256xi32>
      %168 = arith.addi %15, %167 : vector<1x256xi32>
      %c0_i32_56 = arith.constant 0 : i32
      %169 = vector.broadcast %c0_i32_56 : i32 to vector<1x256xi32>
      %170 = arith.cmpi sge, %168, %169 : vector<1x256xi32>
      %c-48_i32_57 = arith.constant -48 : i32
      %171 = vector.broadcast %c-48_i32_57 : i32 to vector<1x256xi32>
      %172 = arith.addi %15, %171 : vector<1x256xi32>
      %c256_i32 = arith.constant 256 : i32
      %173 = vector.broadcast %c256_i32 : i32 to vector<1x256xi32>
      %174 = arith.cmpi slt, %172, %173 : vector<1x256xi32>
      %175 = arith.andi %170, %174 : vector<1x256xi1>
      %cst_58 = arith.constant 0.000000e+00 : f32
      %176 = vector.broadcast %cst_58 : f32 to vector<1x256xf32>
      %177 = arith.select %175, %166, %176 : vector<1x256xi1>, vector<1x256xf32>
      %178 = arith.addf %106, %177 : vector<1x256xf32>
      %cst_59 = arith.constant 0.000000e+00 : f32
      %179 = vector.broadcast %cst_59 : f32 to vector<1x256xf32>
      %cst_60 = arith.constant 0.000000e+00 : f32
      %180 = vector.broadcast %cst_60 : f32 to vector<1x256xf32>
      %c7 = arith.constant 7 : index
      %181 = memref.load %arg3[%c7] : memref<98xf32, #tpu.memory_space<smem>>
      %182 = vector.broadcast %181 : f32 to vector<1x256xf32>
      %183 = arith.mulf %182, %28 : vector<1x256xf32>
      %184 = arith.addf %179, %183 : vector<1x256xf32>
      %c56 = arith.constant 56 : index
      %185 = memref.load %arg3[%c56] : memref<98xf32, #tpu.memory_space<smem>>
      %186 = vector.broadcast %185 : f32 to vector<1x256xf32>
      %187 = arith.mulf %186, %30 : vector<1x256xf32>
      %188 = arith.addf %180, %187 : vector<1x256xf32>
      %c8 = arith.constant 8 : index
      %189 = memref.load %arg3[%c8] : memref<98xf32, #tpu.memory_space<smem>>
      %190 = vector.broadcast %189 : f32 to vector<1x256xf32>
      %191 = arith.mulf %190, %43 : vector<1x256xf32>
      %192 = arith.addf %184, %191 : vector<1x256xf32>
      %c57 = arith.constant 57 : index
      %193 = memref.load %arg3[%c57] : memref<98xf32, #tpu.memory_space<smem>>
      %194 = vector.broadcast %193 : f32 to vector<1x256xf32>
      %195 = arith.mulf %194, %45 : vector<1x256xf32>
      %196 = arith.addf %188, %195 : vector<1x256xf32>
      %c9 = arith.constant 9 : index
      %197 = memref.load %arg3[%c9] : memref<98xf32, #tpu.memory_space<smem>>
      %198 = vector.broadcast %197 : f32 to vector<1x256xf32>
      %199 = arith.mulf %198, %58 : vector<1x256xf32>
      %200 = arith.addf %192, %199 : vector<1x256xf32>
      %c58 = arith.constant 58 : index
      %201 = memref.load %arg3[%c58] : memref<98xf32, #tpu.memory_space<smem>>
      %202 = vector.broadcast %201 : f32 to vector<1x256xf32>
      %203 = arith.mulf %202, %60 : vector<1x256xf32>
      %204 = arith.addf %196, %203 : vector<1x256xf32>
      %c10 = arith.constant 10 : index
      %205 = memref.load %arg3[%c10] : memref<98xf32, #tpu.memory_space<smem>>
      %206 = vector.broadcast %205 : f32 to vector<1x256xf32>
      %207 = arith.mulf %206, %12 : vector<1x256xf32>
      %208 = arith.addf %200, %207 : vector<1x256xf32>
      %c59 = arith.constant 59 : index
      %209 = memref.load %arg3[%c59] : memref<98xf32, #tpu.memory_space<smem>>
      %210 = vector.broadcast %209 : f32 to vector<1x256xf32>
      %211 = arith.mulf %210, %13 : vector<1x256xf32>
      %212 = arith.addf %204, %211 : vector<1x256xf32>
      %c11 = arith.constant 11 : index
      %213 = memref.load %arg3[%c11] : memref<98xf32, #tpu.memory_space<smem>>
      %214 = vector.broadcast %213 : f32 to vector<1x256xf32>
      %215 = arith.mulf %214, %73 : vector<1x256xf32>
      %216 = arith.addf %208, %215 : vector<1x256xf32>
      %c60 = arith.constant 60 : index
      %217 = memref.load %arg3[%c60] : memref<98xf32, #tpu.memory_space<smem>>
      %218 = vector.broadcast %217 : f32 to vector<1x256xf32>
      %219 = arith.mulf %218, %75 : vector<1x256xf32>
      %220 = arith.addf %212, %219 : vector<1x256xf32>
      %c12 = arith.constant 12 : index
      %221 = memref.load %arg3[%c12] : memref<98xf32, #tpu.memory_space<smem>>
      %222 = vector.broadcast %221 : f32 to vector<1x256xf32>
      %223 = arith.mulf %222, %88 : vector<1x256xf32>
      %224 = arith.addf %216, %223 : vector<1x256xf32>
      %c61 = arith.constant 61 : index
      %225 = memref.load %arg3[%c61] : memref<98xf32, #tpu.memory_space<smem>>
      %226 = vector.broadcast %225 : f32 to vector<1x256xf32>
      %227 = arith.mulf %226, %90 : vector<1x256xf32>
      %228 = arith.addf %220, %227 : vector<1x256xf32>
      %c13 = arith.constant 13 : index
      %229 = memref.load %arg3[%c13] : memref<98xf32, #tpu.memory_space<smem>>
      %230 = vector.broadcast %229 : f32 to vector<1x256xf32>
      %231 = arith.mulf %230, %103 : vector<1x256xf32>
      %232 = arith.addf %224, %231 : vector<1x256xf32>
      %c62 = arith.constant 62 : index
      %233 = memref.load %arg3[%c62] : memref<98xf32, #tpu.memory_space<smem>>
      %234 = vector.broadcast %233 : f32 to vector<1x256xf32>
      %235 = arith.mulf %234, %105 : vector<1x256xf32>
      %236 = arith.addf %228, %235 : vector<1x256xf32>
      %237 = arith.addf %232, %236 : vector<1x256xf32>
      %c32_i32 = arith.constant 32 : i32
      %238 = tpu.dynamic_rotate %237 by %c32_i32 dim 1 : vector<1x256xf32>, i32 -> vector<1x256xf32>
      %c-32_i32 = arith.constant -32 : i32
      %239 = vector.broadcast %c-32_i32 : i32 to vector<1x256xi32>
      %240 = arith.addi %15, %239 : vector<1x256xi32>
      %c0_i32_61 = arith.constant 0 : i32
      %241 = vector.broadcast %c0_i32_61 : i32 to vector<1x256xi32>
      %242 = arith.cmpi sge, %240, %241 : vector<1x256xi32>
      %c-32_i32_62 = arith.constant -32 : i32
      %243 = vector.broadcast %c-32_i32_62 : i32 to vector<1x256xi32>
      %244 = arith.addi %15, %243 : vector<1x256xi32>
      %c256_i32_63 = arith.constant 256 : i32
      %245 = vector.broadcast %c256_i32_63 : i32 to vector<1x256xi32>
      %246 = arith.cmpi slt, %244, %245 : vector<1x256xi32>
      %247 = arith.andi %242, %246 : vector<1x256xi1>
      %cst_64 = arith.constant 0.000000e+00 : f32
      %248 = vector.broadcast %cst_64 : f32 to vector<1x256xf32>
      %249 = arith.select %247, %238, %248 : vector<1x256xi1>, vector<1x256xf32>
      %250 = arith.addf %178, %249 : vector<1x256xf32>
      %cst_65 = arith.constant 0.000000e+00 : f32
      %251 = vector.broadcast %cst_65 : f32 to vector<1x256xf32>
      %cst_66 = arith.constant 0.000000e+00 : f32
      %252 = vector.broadcast %cst_66 : f32 to vector<1x256xf32>
      %c14 = arith.constant 14 : index
      %253 = memref.load %arg3[%c14] : memref<98xf32, #tpu.memory_space<smem>>
      %254 = vector.broadcast %253 : f32 to vector<1x256xf32>
      %255 = arith.mulf %254, %28 : vector<1x256xf32>
      %256 = arith.addf %251, %255 : vector<1x256xf32>
      %c63 = arith.constant 63 : index
      %257 = memref.load %arg3[%c63] : memref<98xf32, #tpu.memory_space<smem>>
      %258 = vector.broadcast %257 : f32 to vector<1x256xf32>
      %259 = arith.mulf %258, %30 : vector<1x256xf32>
      %260 = arith.addf %252, %259 : vector<1x256xf32>
      %c15 = arith.constant 15 : index
      %261 = memref.load %arg3[%c15] : memref<98xf32, #tpu.memory_space<smem>>
      %262 = vector.broadcast %261 : f32 to vector<1x256xf32>
      %263 = arith.mulf %262, %43 : vector<1x256xf32>
      %264 = arith.addf %256, %263 : vector<1x256xf32>
      %c64 = arith.constant 64 : index
      %265 = memref.load %arg3[%c64] : memref<98xf32, #tpu.memory_space<smem>>
      %266 = vector.broadcast %265 : f32 to vector<1x256xf32>
      %267 = arith.mulf %266, %45 : vector<1x256xf32>
      %268 = arith.addf %260, %267 : vector<1x256xf32>
      %c16 = arith.constant 16 : index
      %269 = memref.load %arg3[%c16] : memref<98xf32, #tpu.memory_space<smem>>
      %270 = vector.broadcast %269 : f32 to vector<1x256xf32>
      %271 = arith.mulf %270, %58 : vector<1x256xf32>
      %272 = arith.addf %264, %271 : vector<1x256xf32>
      %c65 = arith.constant 65 : index
      %273 = memref.load %arg3[%c65] : memref<98xf32, #tpu.memory_space<smem>>
      %274 = vector.broadcast %273 : f32 to vector<1x256xf32>
      %275 = arith.mulf %274, %60 : vector<1x256xf32>
      %276 = arith.addf %268, %275 : vector<1x256xf32>
      %c17 = arith.constant 17 : index
      %277 = memref.load %arg3[%c17] : memref<98xf32, #tpu.memory_space<smem>>
      %278 = vector.broadcast %277 : f32 to vector<1x256xf32>
      %279 = arith.mulf %278, %12 : vector<1x256xf32>
      %280 = arith.addf %272, %279 : vector<1x256xf32>
      %c66 = arith.constant 66 : index
      %281 = memref.load %arg3[%c66] : memref<98xf32, #tpu.memory_space<smem>>
      %282 = vector.broadcast %281 : f32 to vector<1x256xf32>
      %283 = arith.mulf %282, %13 : vector<1x256xf32>
      %284 = arith.addf %276, %283 : vector<1x256xf32>
      %c18 = arith.constant 18 : index
      %285 = memref.load %arg3[%c18] : memref<98xf32, #tpu.memory_space<smem>>
      %286 = vector.broadcast %285 : f32 to vector<1x256xf32>
      %287 = arith.mulf %286, %73 : vector<1x256xf32>
      %288 = arith.addf %280, %287 : vector<1x256xf32>
      %c67 = arith.constant 67 : index
      %289 = memref.load %arg3[%c67] : memref<98xf32, #tpu.memory_space<smem>>
      %290 = vector.broadcast %289 : f32 to vector<1x256xf32>
      %291 = arith.mulf %290, %75 : vector<1x256xf32>
      %292 = arith.addf %284, %291 : vector<1x256xf32>
      %c19 = arith.constant 19 : index
      %293 = memref.load %arg3[%c19] : memref<98xf32, #tpu.memory_space<smem>>
      %294 = vector.broadcast %293 : f32 to vector<1x256xf32>
      %295 = arith.mulf %294, %88 : vector<1x256xf32>
      %296 = arith.addf %288, %295 : vector<1x256xf32>
      %c68 = arith.constant 68 : index
      %297 = memref.load %arg3[%c68] : memref<98xf32, #tpu.memory_space<smem>>
      %298 = vector.broadcast %297 : f32 to vector<1x256xf32>
      %299 = arith.mulf %298, %90 : vector<1x256xf32>
      %300 = arith.addf %292, %299 : vector<1x256xf32>
      %c20 = arith.constant 20 : index
      %301 = memref.load %arg3[%c20] : memref<98xf32, #tpu.memory_space<smem>>
      %302 = vector.broadcast %301 : f32 to vector<1x256xf32>
      %303 = arith.mulf %302, %103 : vector<1x256xf32>
      %304 = arith.addf %296, %303 : vector<1x256xf32>
      %c69 = arith.constant 69 : index
      %305 = memref.load %arg3[%c69] : memref<98xf32, #tpu.memory_space<smem>>
      %306 = vector.broadcast %305 : f32 to vector<1x256xf32>
      %307 = arith.mulf %306, %105 : vector<1x256xf32>
      %308 = arith.addf %300, %307 : vector<1x256xf32>
      %309 = arith.addf %304, %308 : vector<1x256xf32>
      %c16_i32_67 = arith.constant 16 : i32
      %310 = tpu.dynamic_rotate %309 by %c16_i32_67 dim 1 : vector<1x256xf32>, i32 -> vector<1x256xf32>
      %c-16_i32 = arith.constant -16 : i32
      %311 = vector.broadcast %c-16_i32 : i32 to vector<1x256xi32>
      %312 = arith.addi %15, %311 : vector<1x256xi32>
      %c0_i32_68 = arith.constant 0 : i32
      %313 = vector.broadcast %c0_i32_68 : i32 to vector<1x256xi32>
      %314 = arith.cmpi sge, %312, %313 : vector<1x256xi32>
      %c-16_i32_69 = arith.constant -16 : i32
      %315 = vector.broadcast %c-16_i32_69 : i32 to vector<1x256xi32>
      %316 = arith.addi %15, %315 : vector<1x256xi32>
      %c256_i32_70 = arith.constant 256 : i32
      %317 = vector.broadcast %c256_i32_70 : i32 to vector<1x256xi32>
      %318 = arith.cmpi slt, %316, %317 : vector<1x256xi32>
      %319 = arith.andi %314, %318 : vector<1x256xi1>
      %cst_71 = arith.constant 0.000000e+00 : f32
      %320 = vector.broadcast %cst_71 : f32 to vector<1x256xf32>
      %321 = arith.select %319, %310, %320 : vector<1x256xi1>, vector<1x256xf32>
      %322 = arith.addf %250, %321 : vector<1x256xf32>
      %cst_72 = arith.constant 0.000000e+00 : f32
      %323 = vector.broadcast %cst_72 : f32 to vector<1x256xf32>
      %cst_73 = arith.constant 0.000000e+00 : f32
      %324 = vector.broadcast %cst_73 : f32 to vector<1x256xf32>
      %c21 = arith.constant 21 : index
      %325 = memref.load %arg3[%c21] : memref<98xf32, #tpu.memory_space<smem>>
      %326 = vector.broadcast %325 : f32 to vector<1x256xf32>
      %327 = arith.mulf %326, %28 : vector<1x256xf32>
      %328 = arith.addf %323, %327 : vector<1x256xf32>
      %c70 = arith.constant 70 : index
      %329 = memref.load %arg3[%c70] : memref<98xf32, #tpu.memory_space<smem>>
      %330 = vector.broadcast %329 : f32 to vector<1x256xf32>
      %331 = arith.mulf %330, %30 : vector<1x256xf32>
      %332 = arith.addf %324, %331 : vector<1x256xf32>
      %c22 = arith.constant 22 : index
      %333 = memref.load %arg3[%c22] : memref<98xf32, #tpu.memory_space<smem>>
      %334 = vector.broadcast %333 : f32 to vector<1x256xf32>
      %335 = arith.mulf %334, %43 : vector<1x256xf32>
      %336 = arith.addf %328, %335 : vector<1x256xf32>
      %c71 = arith.constant 71 : index
      %337 = memref.load %arg3[%c71] : memref<98xf32, #tpu.memory_space<smem>>
      %338 = vector.broadcast %337 : f32 to vector<1x256xf32>
      %339 = arith.mulf %338, %45 : vector<1x256xf32>
      %340 = arith.addf %332, %339 : vector<1x256xf32>
      %c23 = arith.constant 23 : index
      %341 = memref.load %arg3[%c23] : memref<98xf32, #tpu.memory_space<smem>>
      %342 = vector.broadcast %341 : f32 to vector<1x256xf32>
      %343 = arith.mulf %342, %58 : vector<1x256xf32>
      %344 = arith.addf %336, %343 : vector<1x256xf32>
      %c72 = arith.constant 72 : index
      %345 = memref.load %arg3[%c72] : memref<98xf32, #tpu.memory_space<smem>>
      %346 = vector.broadcast %345 : f32 to vector<1x256xf32>
      %347 = arith.mulf %346, %60 : vector<1x256xf32>
      %348 = arith.addf %340, %347 : vector<1x256xf32>
      %c24 = arith.constant 24 : index
      %349 = memref.load %arg3[%c24] : memref<98xf32, #tpu.memory_space<smem>>
      %350 = vector.broadcast %349 : f32 to vector<1x256xf32>
      %351 = arith.mulf %350, %12 : vector<1x256xf32>
      %352 = arith.addf %344, %351 : vector<1x256xf32>
      %c73 = arith.constant 73 : index
      %353 = memref.load %arg3[%c73] : memref<98xf32, #tpu.memory_space<smem>>
      %354 = vector.broadcast %353 : f32 to vector<1x256xf32>
      %355 = arith.mulf %354, %13 : vector<1x256xf32>
      %356 = arith.addf %348, %355 : vector<1x256xf32>
      %c25 = arith.constant 25 : index
      %357 = memref.load %arg3[%c25] : memref<98xf32, #tpu.memory_space<smem>>
      %358 = vector.broadcast %357 : f32 to vector<1x256xf32>
      %359 = arith.mulf %358, %73 : vector<1x256xf32>
      %360 = arith.addf %352, %359 : vector<1x256xf32>
      %c74 = arith.constant 74 : index
      %361 = memref.load %arg3[%c74] : memref<98xf32, #tpu.memory_space<smem>>
      %362 = vector.broadcast %361 : f32 to vector<1x256xf32>
      %363 = arith.mulf %362, %75 : vector<1x256xf32>
      %364 = arith.addf %356, %363 : vector<1x256xf32>
      %c26 = arith.constant 26 : index
      %365 = memref.load %arg3[%c26] : memref<98xf32, #tpu.memory_space<smem>>
      %366 = vector.broadcast %365 : f32 to vector<1x256xf32>
      %367 = arith.mulf %366, %88 : vector<1x256xf32>
      %368 = arith.addf %360, %367 : vector<1x256xf32>
      %c75 = arith.constant 75 : index
      %369 = memref.load %arg3[%c75] : memref<98xf32, #tpu.memory_space<smem>>
      %370 = vector.broadcast %369 : f32 to vector<1x256xf32>
      %371 = arith.mulf %370, %90 : vector<1x256xf32>
      %372 = arith.addf %364, %371 : vector<1x256xf32>
      %c27 = arith.constant 27 : index
      %373 = memref.load %arg3[%c27] : memref<98xf32, #tpu.memory_space<smem>>
      %374 = vector.broadcast %373 : f32 to vector<1x256xf32>
      %375 = arith.mulf %374, %103 : vector<1x256xf32>
      %376 = arith.addf %368, %375 : vector<1x256xf32>
      %c76 = arith.constant 76 : index
      %377 = memref.load %arg3[%c76] : memref<98xf32, #tpu.memory_space<smem>>
      %378 = vector.broadcast %377 : f32 to vector<1x256xf32>
      %379 = arith.mulf %378, %105 : vector<1x256xf32>
      %380 = arith.addf %372, %379 : vector<1x256xf32>
      %381 = arith.addf %376, %380 : vector<1x256xf32>
      %c0_i32_74 = arith.constant 0 : i32
      %382 = vector.broadcast %c0_i32_74 : i32 to vector<1x256xi32>
      %383 = arith.addi %15, %382 : vector<1x256xi32>
      %c0_i32_75 = arith.constant 0 : i32
      %384 = vector.broadcast %c0_i32_75 : i32 to vector<1x256xi32>
      %385 = arith.cmpi sge, %383, %384 : vector<1x256xi32>
      %c0_i32_76 = arith.constant 0 : i32
      %386 = vector.broadcast %c0_i32_76 : i32 to vector<1x256xi32>
      %387 = arith.addi %15, %386 : vector<1x256xi32>
      %c256_i32_77 = arith.constant 256 : i32
      %388 = vector.broadcast %c256_i32_77 : i32 to vector<1x256xi32>
      %389 = arith.cmpi slt, %387, %388 : vector<1x256xi32>
      %390 = arith.andi %385, %389 : vector<1x256xi1>
      %cst_78 = arith.constant 0.000000e+00 : f32
      %391 = vector.broadcast %cst_78 : f32 to vector<1x256xf32>
      %392 = arith.select %390, %381, %391 : vector<1x256xi1>, vector<1x256xf32>
      %393 = arith.addf %322, %392 : vector<1x256xf32>
      %cst_79 = arith.constant 0.000000e+00 : f32
      %394 = vector.broadcast %cst_79 : f32 to vector<1x256xf32>
      %cst_80 = arith.constant 0.000000e+00 : f32
      %395 = vector.broadcast %cst_80 : f32 to vector<1x256xf32>
      %c28 = arith.constant 28 : index
      %396 = memref.load %arg3[%c28] : memref<98xf32, #tpu.memory_space<smem>>
      %397 = vector.broadcast %396 : f32 to vector<1x256xf32>
      %398 = arith.mulf %397, %28 : vector<1x256xf32>
      %399 = arith.addf %394, %398 : vector<1x256xf32>
      %c77 = arith.constant 77 : index
      %400 = memref.load %arg3[%c77] : memref<98xf32, #tpu.memory_space<smem>>
      %401 = vector.broadcast %400 : f32 to vector<1x256xf32>
      %402 = arith.mulf %401, %30 : vector<1x256xf32>
      %403 = arith.addf %395, %402 : vector<1x256xf32>
      %c29 = arith.constant 29 : index
      %404 = memref.load %arg3[%c29] : memref<98xf32, #tpu.memory_space<smem>>
      %405 = vector.broadcast %404 : f32 to vector<1x256xf32>
      %406 = arith.mulf %405, %43 : vector<1x256xf32>
      %407 = arith.addf %399, %406 : vector<1x256xf32>
      %c78 = arith.constant 78 : index
      %408 = memref.load %arg3[%c78] : memref<98xf32, #tpu.memory_space<smem>>
      %409 = vector.broadcast %408 : f32 to vector<1x256xf32>
      %410 = arith.mulf %409, %45 : vector<1x256xf32>
      %411 = arith.addf %403, %410 : vector<1x256xf32>
      %c30 = arith.constant 30 : index
      %412 = memref.load %arg3[%c30] : memref<98xf32, #tpu.memory_space<smem>>
      %413 = vector.broadcast %412 : f32 to vector<1x256xf32>
      %414 = arith.mulf %413, %58 : vector<1x256xf32>
      %415 = arith.addf %407, %414 : vector<1x256xf32>
      %c79 = arith.constant 79 : index
      %416 = memref.load %arg3[%c79] : memref<98xf32, #tpu.memory_space<smem>>
      %417 = vector.broadcast %416 : f32 to vector<1x256xf32>
      %418 = arith.mulf %417, %60 : vector<1x256xf32>
      %419 = arith.addf %411, %418 : vector<1x256xf32>
      %c31 = arith.constant 31 : index
      %420 = memref.load %arg3[%c31] : memref<98xf32, #tpu.memory_space<smem>>
      %421 = vector.broadcast %420 : f32 to vector<1x256xf32>
      %422 = arith.mulf %421, %12 : vector<1x256xf32>
      %423 = arith.addf %415, %422 : vector<1x256xf32>
      %c80 = arith.constant 80 : index
      %424 = memref.load %arg3[%c80] : memref<98xf32, #tpu.memory_space<smem>>
      %425 = vector.broadcast %424 : f32 to vector<1x256xf32>
      %426 = arith.mulf %425, %13 : vector<1x256xf32>
      %427 = arith.addf %419, %426 : vector<1x256xf32>
      %c32 = arith.constant 32 : index
      %428 = memref.load %arg3[%c32] : memref<98xf32, #tpu.memory_space<smem>>
      %429 = vector.broadcast %428 : f32 to vector<1x256xf32>
      %430 = arith.mulf %429, %73 : vector<1x256xf32>
      %431 = arith.addf %423, %430 : vector<1x256xf32>
      %c81 = arith.constant 81 : index
      %432 = memref.load %arg3[%c81] : memref<98xf32, #tpu.memory_space<smem>>
      %433 = vector.broadcast %432 : f32 to vector<1x256xf32>
      %434 = arith.mulf %433, %75 : vector<1x256xf32>
      %435 = arith.addf %427, %434 : vector<1x256xf32>
      %c33 = arith.constant 33 : index
      %436 = memref.load %arg3[%c33] : memref<98xf32, #tpu.memory_space<smem>>
      %437 = vector.broadcast %436 : f32 to vector<1x256xf32>
      %438 = arith.mulf %437, %88 : vector<1x256xf32>
      %439 = arith.addf %431, %438 : vector<1x256xf32>
      %c82 = arith.constant 82 : index
      %440 = memref.load %arg3[%c82] : memref<98xf32, #tpu.memory_space<smem>>
      %441 = vector.broadcast %440 : f32 to vector<1x256xf32>
      %442 = arith.mulf %441, %90 : vector<1x256xf32>
      %443 = arith.addf %435, %442 : vector<1x256xf32>
      %c34 = arith.constant 34 : index
      %444 = memref.load %arg3[%c34] : memref<98xf32, #tpu.memory_space<smem>>
      %445 = vector.broadcast %444 : f32 to vector<1x256xf32>
      %446 = arith.mulf %445, %103 : vector<1x256xf32>
      %447 = arith.addf %439, %446 : vector<1x256xf32>
      %c83 = arith.constant 83 : index
      %448 = memref.load %arg3[%c83] : memref<98xf32, #tpu.memory_space<smem>>
      %449 = vector.broadcast %448 : f32 to vector<1x256xf32>
      %450 = arith.mulf %449, %105 : vector<1x256xf32>
      %451 = arith.addf %443, %450 : vector<1x256xf32>
      %452 = arith.addf %447, %451 : vector<1x256xf32>
      %c240_i32 = arith.constant 240 : i32
      %453 = tpu.dynamic_rotate %452 by %c240_i32 dim 1 : vector<1x256xf32>, i32 -> vector<1x256xf32>
      %c16_i32_81 = arith.constant 16 : i32
      %454 = vector.broadcast %c16_i32_81 : i32 to vector<1x256xi32>
      %455 = arith.addi %15, %454 : vector<1x256xi32>
      %c0_i32_82 = arith.constant 0 : i32
      %456 = vector.broadcast %c0_i32_82 : i32 to vector<1x256xi32>
      %457 = arith.cmpi sge, %455, %456 : vector<1x256xi32>
      %c16_i32_83 = arith.constant 16 : i32
      %458 = vector.broadcast %c16_i32_83 : i32 to vector<1x256xi32>
      %459 = arith.addi %15, %458 : vector<1x256xi32>
      %c256_i32_84 = arith.constant 256 : i32
      %460 = vector.broadcast %c256_i32_84 : i32 to vector<1x256xi32>
      %461 = arith.cmpi slt, %459, %460 : vector<1x256xi32>
      %462 = arith.andi %457, %461 : vector<1x256xi1>
      %cst_85 = arith.constant 0.000000e+00 : f32
      %463 = vector.broadcast %cst_85 : f32 to vector<1x256xf32>
      %464 = arith.select %462, %453, %463 : vector<1x256xi1>, vector<1x256xf32>
      %465 = arith.addf %393, %464 : vector<1x256xf32>
      %cst_86 = arith.constant 0.000000e+00 : f32
      %466 = vector.broadcast %cst_86 : f32 to vector<1x256xf32>
      %cst_87 = arith.constant 0.000000e+00 : f32
      %467 = vector.broadcast %cst_87 : f32 to vector<1x256xf32>
      %c35 = arith.constant 35 : index
      %468 = memref.load %arg3[%c35] : memref<98xf32, #tpu.memory_space<smem>>
      %469 = vector.broadcast %468 : f32 to vector<1x256xf32>
      %470 = arith.mulf %469, %28 : vector<1x256xf32>
      %471 = arith.addf %466, %470 : vector<1x256xf32>
      %c84 = arith.constant 84 : index
      %472 = memref.load %arg3[%c84] : memref<98xf32, #tpu.memory_space<smem>>
      %473 = vector.broadcast %472 : f32 to vector<1x256xf32>
      %474 = arith.mulf %473, %30 : vector<1x256xf32>
      %475 = arith.addf %467, %474 : vector<1x256xf32>
      %c36 = arith.constant 36 : index
      %476 = memref.load %arg3[%c36] : memref<98xf32, #tpu.memory_space<smem>>
      %477 = vector.broadcast %476 : f32 to vector<1x256xf32>
      %478 = arith.mulf %477, %43 : vector<1x256xf32>
      %479 = arith.addf %471, %478 : vector<1x256xf32>
      %c85 = arith.constant 85 : index
      %480 = memref.load %arg3[%c85] : memref<98xf32, #tpu.memory_space<smem>>
      %481 = vector.broadcast %480 : f32 to vector<1x256xf32>
      %482 = arith.mulf %481, %45 : vector<1x256xf32>
      %483 = arith.addf %475, %482 : vector<1x256xf32>
      %c37 = arith.constant 37 : index
      %484 = memref.load %arg3[%c37] : memref<98xf32, #tpu.memory_space<smem>>
      %485 = vector.broadcast %484 : f32 to vector<1x256xf32>
      %486 = arith.mulf %485, %58 : vector<1x256xf32>
      %487 = arith.addf %479, %486 : vector<1x256xf32>
      %c86 = arith.constant 86 : index
      %488 = memref.load %arg3[%c86] : memref<98xf32, #tpu.memory_space<smem>>
      %489 = vector.broadcast %488 : f32 to vector<1x256xf32>
      %490 = arith.mulf %489, %60 : vector<1x256xf32>
      %491 = arith.addf %483, %490 : vector<1x256xf32>
      %c38 = arith.constant 38 : index
      %492 = memref.load %arg3[%c38] : memref<98xf32, #tpu.memory_space<smem>>
      %493 = vector.broadcast %492 : f32 to vector<1x256xf32>
      %494 = arith.mulf %493, %12 : vector<1x256xf32>
      %495 = arith.addf %487, %494 : vector<1x256xf32>
      %c87 = arith.constant 87 : index
      %496 = memref.load %arg3[%c87] : memref<98xf32, #tpu.memory_space<smem>>
      %497 = vector.broadcast %496 : f32 to vector<1x256xf32>
      %498 = arith.mulf %497, %13 : vector<1x256xf32>
      %499 = arith.addf %491, %498 : vector<1x256xf32>
      %c39 = arith.constant 39 : index
      %500 = memref.load %arg3[%c39] : memref<98xf32, #tpu.memory_space<smem>>
      %501 = vector.broadcast %500 : f32 to vector<1x256xf32>
      %502 = arith.mulf %501, %73 : vector<1x256xf32>
      %503 = arith.addf %495, %502 : vector<1x256xf32>
      %c88 = arith.constant 88 : index
      %504 = memref.load %arg3[%c88] : memref<98xf32, #tpu.memory_space<smem>>
      %505 = vector.broadcast %504 : f32 to vector<1x256xf32>
      %506 = arith.mulf %505, %75 : vector<1x256xf32>
      %507 = arith.addf %499, %506 : vector<1x256xf32>
      %c40 = arith.constant 40 : index
      %508 = memref.load %arg3[%c40] : memref<98xf32, #tpu.memory_space<smem>>
      %509 = vector.broadcast %508 : f32 to vector<1x256xf32>
      %510 = arith.mulf %509, %88 : vector<1x256xf32>
      %511 = arith.addf %503, %510 : vector<1x256xf32>
      %c89 = arith.constant 89 : index
      %512 = memref.load %arg3[%c89] : memref<98xf32, #tpu.memory_space<smem>>
      %513 = vector.broadcast %512 : f32 to vector<1x256xf32>
      %514 = arith.mulf %513, %90 : vector<1x256xf32>
      %515 = arith.addf %507, %514 : vector<1x256xf32>
      %c41 = arith.constant 41 : index
      %516 = memref.load %arg3[%c41] : memref<98xf32, #tpu.memory_space<smem>>
      %517 = vector.broadcast %516 : f32 to vector<1x256xf32>
      %518 = arith.mulf %517, %103 : vector<1x256xf32>
      %519 = arith.addf %511, %518 : vector<1x256xf32>
      %c90 = arith.constant 90 : index
      %520 = memref.load %arg3[%c90] : memref<98xf32, #tpu.memory_space<smem>>
      %521 = vector.broadcast %520 : f32 to vector<1x256xf32>
      %522 = arith.mulf %521, %105 : vector<1x256xf32>
      %523 = arith.addf %515, %522 : vector<1x256xf32>
      %524 = arith.addf %519, %523 : vector<1x256xf32>
      %c224_i32 = arith.constant 224 : i32
      %525 = tpu.dynamic_rotate %524 by %c224_i32 dim 1 : vector<1x256xf32>, i32 -> vector<1x256xf32>
      %c32_i32_88 = arith.constant 32 : i32
      %526 = vector.broadcast %c32_i32_88 : i32 to vector<1x256xi32>
      %527 = arith.addi %15, %526 : vector<1x256xi32>
      %c0_i32_89 = arith.constant 0 : i32
      %528 = vector.broadcast %c0_i32_89 : i32 to vector<1x256xi32>
      %529 = arith.cmpi sge, %527, %528 : vector<1x256xi32>
      %c32_i32_90 = arith.constant 32 : i32
      %530 = vector.broadcast %c32_i32_90 : i32 to vector<1x256xi32>
      %531 = arith.addi %15, %530 : vector<1x256xi32>
      %c256_i32_91 = arith.constant 256 : i32
      %532 = vector.broadcast %c256_i32_91 : i32 to vector<1x256xi32>
      %533 = arith.cmpi slt, %531, %532 : vector<1x256xi32>
      %534 = arith.andi %529, %533 : vector<1x256xi1>
      %cst_92 = arith.constant 0.000000e+00 : f32
      %535 = vector.broadcast %cst_92 : f32 to vector<1x256xf32>
      %536 = arith.select %534, %525, %535 : vector<1x256xi1>, vector<1x256xf32>
      %537 = arith.addf %465, %536 : vector<1x256xf32>
      %cst_93 = arith.constant 0.000000e+00 : f32
      %538 = vector.broadcast %cst_93 : f32 to vector<1x256xf32>
      %cst_94 = arith.constant 0.000000e+00 : f32
      %539 = vector.broadcast %cst_94 : f32 to vector<1x256xf32>
      %c42 = arith.constant 42 : index
      %540 = memref.load %arg3[%c42] : memref<98xf32, #tpu.memory_space<smem>>
      %541 = vector.broadcast %540 : f32 to vector<1x256xf32>
      %542 = arith.mulf %541, %28 : vector<1x256xf32>
      %543 = arith.addf %538, %542 : vector<1x256xf32>
      %c91 = arith.constant 91 : index
      %544 = memref.load %arg3[%c91] : memref<98xf32, #tpu.memory_space<smem>>
      %545 = vector.broadcast %544 : f32 to vector<1x256xf32>
      %546 = arith.mulf %545, %30 : vector<1x256xf32>
      %547 = arith.addf %539, %546 : vector<1x256xf32>
      %c43 = arith.constant 43 : index
      %548 = memref.load %arg3[%c43] : memref<98xf32, #tpu.memory_space<smem>>
      %549 = vector.broadcast %548 : f32 to vector<1x256xf32>
      %550 = arith.mulf %549, %43 : vector<1x256xf32>
      %551 = arith.addf %543, %550 : vector<1x256xf32>
      %c92 = arith.constant 92 : index
      %552 = memref.load %arg3[%c92] : memref<98xf32, #tpu.memory_space<smem>>
      %553 = vector.broadcast %552 : f32 to vector<1x256xf32>
      %554 = arith.mulf %553, %45 : vector<1x256xf32>
      %555 = arith.addf %547, %554 : vector<1x256xf32>
      %c44 = arith.constant 44 : index
      %556 = memref.load %arg3[%c44] : memref<98xf32, #tpu.memory_space<smem>>
      %557 = vector.broadcast %556 : f32 to vector<1x256xf32>
      %558 = arith.mulf %557, %58 : vector<1x256xf32>
      %559 = arith.addf %551, %558 : vector<1x256xf32>
      %c93 = arith.constant 93 : index
      %560 = memref.load %arg3[%c93] : memref<98xf32, #tpu.memory_space<smem>>
      %561 = vector.broadcast %560 : f32 to vector<1x256xf32>
      %562 = arith.mulf %561, %60 : vector<1x256xf32>
      %563 = arith.addf %555, %562 : vector<1x256xf32>
      %c45 = arith.constant 45 : index
      %564 = memref.load %arg3[%c45] : memref<98xf32, #tpu.memory_space<smem>>
      %565 = vector.broadcast %564 : f32 to vector<1x256xf32>
      %566 = arith.mulf %565, %12 : vector<1x256xf32>
      %567 = arith.addf %559, %566 : vector<1x256xf32>
      %c94 = arith.constant 94 : index
      %568 = memref.load %arg3[%c94] : memref<98xf32, #tpu.memory_space<smem>>
      %569 = vector.broadcast %568 : f32 to vector<1x256xf32>
      %570 = arith.mulf %569, %13 : vector<1x256xf32>
      %571 = arith.addf %563, %570 : vector<1x256xf32>
      %c46 = arith.constant 46 : index
      %572 = memref.load %arg3[%c46] : memref<98xf32, #tpu.memory_space<smem>>
      %573 = vector.broadcast %572 : f32 to vector<1x256xf32>
      %574 = arith.mulf %573, %73 : vector<1x256xf32>
      %575 = arith.addf %567, %574 : vector<1x256xf32>
      %c95 = arith.constant 95 : index
      %576 = memref.load %arg3[%c95] : memref<98xf32, #tpu.memory_space<smem>>
      %577 = vector.broadcast %576 : f32 to vector<1x256xf32>
      %578 = arith.mulf %577, %75 : vector<1x256xf32>
      %579 = arith.addf %571, %578 : vector<1x256xf32>
      %c47 = arith.constant 47 : index
      %580 = memref.load %arg3[%c47] : memref<98xf32, #tpu.memory_space<smem>>
      %581 = vector.broadcast %580 : f32 to vector<1x256xf32>
      %582 = arith.mulf %581, %88 : vector<1x256xf32>
      %583 = arith.addf %575, %582 : vector<1x256xf32>
      %c96 = arith.constant 96 : index
      %584 = memref.load %arg3[%c96] : memref<98xf32, #tpu.memory_space<smem>>
      %585 = vector.broadcast %584 : f32 to vector<1x256xf32>
      %586 = arith.mulf %585, %90 : vector<1x256xf32>
      %587 = arith.addf %579, %586 : vector<1x256xf32>
      %c48 = arith.constant 48 : index
      %588 = memref.load %arg3[%c48] : memref<98xf32, #tpu.memory_space<smem>>
      %589 = vector.broadcast %588 : f32 to vector<1x256xf32>
      %590 = arith.mulf %589, %103 : vector<1x256xf32>
      %591 = arith.addf %583, %590 : vector<1x256xf32>
      %c97 = arith.constant 97 : index
      %592 = memref.load %arg3[%c97] : memref<98xf32, #tpu.memory_space<smem>>
      %593 = vector.broadcast %592 : f32 to vector<1x256xf32>
      %594 = arith.mulf %593, %105 : vector<1x256xf32>
      %595 = arith.addf %587, %594 : vector<1x256xf32>
      %596 = arith.addf %591, %595 : vector<1x256xf32>
      %c208_i32 = arith.constant 208 : i32
      %597 = tpu.dynamic_rotate %596 by %c208_i32 dim 1 : vector<1x256xf32>, i32 -> vector<1x256xf32>
      %c48_i32_95 = arith.constant 48 : i32
      %598 = vector.broadcast %c48_i32_95 : i32 to vector<1x256xi32>
      %599 = arith.addi %15, %598 : vector<1x256xi32>
      %c0_i32_96 = arith.constant 0 : i32
      %600 = vector.broadcast %c0_i32_96 : i32 to vector<1x256xi32>
      %601 = arith.cmpi sge, %599, %600 : vector<1x256xi32>
      %c48_i32_97 = arith.constant 48 : i32
      %602 = vector.broadcast %c48_i32_97 : i32 to vector<1x256xi32>
      %603 = arith.addi %15, %602 : vector<1x256xi32>
      %c256_i32_98 = arith.constant 256 : i32
      %604 = vector.broadcast %c256_i32_98 : i32 to vector<1x256xi32>
      %605 = arith.cmpi slt, %603, %604 : vector<1x256xi32>
      %606 = arith.andi %601, %605 : vector<1x256xi1>
      %cst_99 = arith.constant 0.000000e+00 : f32
      %607 = vector.broadcast %cst_99 : f32 to vector<1x256xf32>
      %608 = arith.select %606, %597, %607 : vector<1x256xi1>, vector<1x256xf32>
      %609 = arith.addf %537, %608 : vector<1x256xf32>
      %610 = arith.negf %609 : vector<1x256xf32>
      %611 = math.exp %610 : vector<1x256xf32>
      %cst_100 = arith.constant 1.000000e+00 : f32
      %612 = vector.broadcast %cst_100 : f32 to vector<1x256xf32>
      %613 = arith.addf %612, %611 : vector<1x256xf32>
      %614 = arith.divf %612, %613 : vector<1x256xf32>
      %c0_101 = arith.constant 0 : index
      %c0_102 = arith.constant 0 : index
      %c0_103 = arith.constant 0 : index
      %615 = vector.load %arg5[%c0_101, %c0_102, %c0_103] : memref<1x1x256xf32, #tpu.memory_space<vmem>>, vector<1x1x256xf32>
      %616 = vector.shape_cast %615 : vector<1x1x256xf32> to vector<1x256xf32>
      %617 = vector.shape_cast %614 : vector<1x256xf32> to vector<1x1x256xf32>
      tpu.vector_store %arg5[%c0_101, %c0_102, %c0_103], %617 {strides = array<i32>} : memref<1x1x256xf32, #tpu.memory_space<vmem>>, vector<1x1x256xf32>,
    } else {
    }
    return
  }
  func.func @transform_0(%arg0: i32, %arg1: i32) -> (i32, i32, i32) {
    %c0_i32 = arith.constant 0 : i32
    %c0_i32_0 = arith.constant 0 : i32
    return %arg0, %arg1, %c0_i32 : i32, i32, i32
  }
  func.func @transform_1(%arg0: i32, %arg1: i32) -> i32 {
    %c0_i32 = arith.constant 0 : i32
    %c0_i32_0 = arith.constant 0 : i32
    return %c0_i32 : i32
  }
  func.func @transform_2(%arg0: i32, %arg1: i32) -> (i32, i32) {
    %c0_i32 = arith.constant 0 : i32
    %c0_i32_0 = arith.constant 0 : i32
    %c0_i32_1 = arith.constant 0 : i32
    return %c0_i32, %c0_i32_0 : i32, i32
  }
  func.func @transform_3(%arg0: i32, %arg1: i32) -> (i32, i32, i32) {
    %c0_i32 = arith.constant 0 : i32
    %c0_i32_0 = arith.constant 0 : i32
    %c0_i32_1 = arith.constant 0 : i32
    return %arg0, %c0_i32, %c0_i32_0 : i32, i32, i32
  }
}

</mosaic_0001>

<llo_original>
// kernel: spatial_attention.1
$region0: #{spatial_attention.1}
  #allocation0 [shape = 'u32[]', space=smem, size = 0x4, offset = 0x4, fixed_abs, tag = 'smem constant byte address 0x4 - core index']
  #allocation1 [shape = 'u32[72,128]{1,0:T(1,128)}', space=vmem, size = 0x9000, scoped, tag = 'internal scratch']
  #allocation2 [shape = 'f32[1,256]{1,0:T(1,128)}', space=vmem, size = 0x400, scoped, tag = 'scratch operand']
  #allocation3 [shape = 'f32[1,256]{1,0:T(1,128)}', space=vmem, size = 0x400, scoped, tag = 'scratch operand']
  %s0 = inlined_call_operand.vmem [shape: f32[2,4,256], index: 0, kind: input, shape index: {}]
  %s1 = inlined_call_operand.vmem [shape: f32[98], index: 1, kind: input, shape index: {}]
  %s2 = inlined_call_operand.vmem [shape: s32[1,256], index: 2, kind: input, shape index: {}]
  %s3 = inlined_call_operand.vmem [shape: f32[2,1,256], index: 3, kind: output, shape index: {}]
  %s4 = sld [smem:[#allocation0]]
  $region61: #{spatial_attention.1} parent=0
    _
  %s6 = ssub.s32 1, %s4
  %s7 = scalar_select 0, %s6, %s4
  $region1: #{spatial_attention.1} parent=0
    #allocation4 [shape = 'u8[512]{0}', space=smem, size = 0x200, scoped, tag = 'input window, operand 1, single buffered']
    #allocation5 [shape = 's32[2]{0}', space=sflag, size = 0x8, scoped, tag = 'scoped memory for spatial_attention.1']
    %8 = vsyncpa [#allocation5], 0
    loop: start=0, step=1, limit=4
    $region2: #{spatial_attention.1} parent=1 // loop_pre_header
      _
    $region3: #{spatial_attention.1} parent=1 // loop_header
      %s10 = sphi 0, %s14
      %p11 = scmp.ge.s32.totalorder %s10, 4
      %s17 = sphi 0, %s29
      %s18 = sphi 0, %s25
      %s19 = sphi 0, %s17
      %s20 = sphi 0, %s18
      %s21 = sphi 0, %s19
      %s22 = sphi 0, %s20
      %s34 = sphi 0, %s36
      %s37 = sphi 0, %s34
      %s38 = sphi 0, %s37
      %s54 = sphi 0, %s38
      %s58 = sphi 0, %s58
      %s60 = sphi 0, %s58
      %s61 = sphi 0, %s60
      %s75 = sphi 0, %s61
      %s79 = sphi 0, %s79
      %s81 = sphi 0, %s79
      %s82 = sphi 0, %s81
      %s96 = sphi 0, %s82
      %s102 = sphi 0, %s104
      %s105 = sphi 0, %s102
      %s106 = sphi 0, %s105
      %s122 = sphi 0, %s106
    $region4: #{spatial_attention.1} parent=1 // loop_header_branch
      %13 = sbr.rel (%p11) target = $region8
    $region5: #{spatial_attention.1} parent=1 // loop_body
      %s15 = ssub.s32 %s10, 1
      %s16 = ssub.s32 %s10, 2
      %s23 = sadd.s32 1, %s18
      %p24 = scmp.ge.s32.totalorder %s23, 1
      %s25 = scalar_select %p24, 0, %s23
      %s26 = sadd.s32 1, %s17
      %s27 = scalar_select %p24, %s26, %s17
      %p28 = scmp.ge.s32.totalorder %s27, 2
      %s29 = scalar_select %p28, 0, %s27
      %s30 = ssub.s32 %s17, %s29
      %s31 = ssub.s32 %s18, %s25
      %s32 = sor.u32 %s30, %s31
      %p33 = scmp.eq.s32.totalorder %s32, 0
      %s35 = sadd.s32 %s34, 1
      %s36 = scalar_select %p33, %s34, %s35
      %p39 = pneg %p33
      %p40 = scmp.eq.s32.totalorder %s10, 1
      %p41 = por %p39, %p40
      %p42 = scmp.ne.s32.totalorder %s34, %s37
      %p43 = scmp.eq.s32.totalorder %s10, 0
      %p44 = por %p42, %p43
      %p45 = scmp.ne.s32.totalorder %s34, %s37
      %p46 = scmp.eq.s32.totalorder %s15, 1
      %p47 = por %p45, %p46
      %p48 = scmp.ne.s32.totalorder %s37, %s38
      %p49 = scmp.eq.s32.totalorder %s15, 0
      %p50 = por %p48, %p49
      %p51 = scmp.ne.s32.totalorder %s37, %s38
      %p52 = scmp.eq.s32.totalorder %s16, 1
      %p53 = por %p51, %p52
      %p55 = scmp.ne.s32.totalorder %s38, %s54
      %p56 = scmp.eq.s32.totalorder %s16, 0
      %p57 = por %p55, %p56
      %s59 = sadd.s32 %s58, 1
      %p62 = scmp.eq.s32.totalorder %s10, 1
      %p63 = scmp.ne.s32.totalorder %s58, %s60
      %p64 = scmp.eq.s32.totalorder %s10, 0
      %p65 = por %p63, %p64
      %p66 = scmp.ne.s32.totalorder %s58, %s60
      %p67 = scmp.eq.s32.totalorder %s15, 1
      %p68 = por %p66, %p67
      %p69 = scmp.ne.s32.totalorder %s60, %s61
      %p70 = scmp.eq.s32.totalorder %s15, 0
      %p71 = por %p69, %p70
      %p72 = scmp.ne.s32.totalorder %s60, %s61
      %p73 = scmp.eq.s32.totalorder %s16, 1
      %p74 = por %p72, %p73
      %p76 = scmp.ne.s32.totalorder %s61, %s75
      %p77 = scmp.eq.s32.totalorder %s16, 0
      %p78 = por %p76, %p77
      %s80 = sadd.s32 %s79, 1
      %p83 = scmp.eq.s32.totalorder %s10, 1
      %p84 = scmp.ne.s32.totalorder %s79, %s81
      %p85 = scmp.eq.s32.totalorder %s10, 0
      %p86 = por %p84, %p85
      %p87 = scmp.ne.s32.totalorder %s79, %s81
      %p88 = scmp.eq.s32.totalorder %s15, 1
      %p89 = por %p87, %p88
      %p90 = scmp.ne.s32.totalorder %s81, %s82
      %p91 = scmp.eq.s32.totalorder %s15, 0
      %p92 = por %p90, %p91
      %p93 = scmp.ne.s32.totalorder %s81, %s82
      %p94 = scmp.eq.s32.totalorder %s16, 1
      %p95 = por %p93, %p94
      %p97 = scmp.ne.s32.totalorder %s82, %s96
      %p98 = scmp.eq.s32.totalorder %s16, 0
      %p99 = por %p97, %p98
      %s100 = ssub.s32 %s17, %s29
      %p101 = scmp.eq.s32.totalorder %s100, 0
      %s103 = sadd.s32 %s102, 1
      %s104 = scalar_select %p101, %s102, %s103
      %p107 = pneg %p101
      %p108 = scmp.eq.s32.totalorder %s10, 1
      %p109 = por %p107, %p108
      %p110 = scmp.ne.s32.totalorder %s102, %s105
      %p111 = scmp.eq.s32.totalorder %s10, 0
      %p112 = por %p110, %p111
      %p113 = scmp.ne.s32.totalorder %s102, %s105
      %p114 = scmp.eq.s32.totalorder %s15, 1
      %p115 = por %p113, %p114
      %p116 = scmp.ne.s32.totalorder %s105, %s106
      %p117 = scmp.eq.s32.totalorder %s15, 0
      %p118 = por %p116, %p117
      %p119 = scmp.ne.s32.totalorder %s105, %s106
      %p120 = scmp.eq.s32.totalorder %s16, 1
      %p121 = por %p119, %p120
      %p123 = scmp.ne.s32.totalorder %s106, %s122
      %p124 = scmp.eq.s32.totalorder %s16, 0
      %p125 = por %p123, %p124
      %p126 = scmp.le.s32.totalorder 1, %s10
      %p127 = scmp.lt.s32.totalorder %s10, 3
      %p128 = pnand %p126, %p127
      %p129 = pneg %p128
      // Predicated region
      $region9: #{spatial_attention.1} parent=5 // pred_check
        _
      $region10: #{spatial_attention.1} parent=5 // pred_check_branch
        %131 = sbr.rel (%p128) target = $region12
      $region11: #{spatial_attention.1} parent=5 // pred_region
        %s132 = ssub.s32 %s10, 1
        // Predicated region
        $region13: #{spatial_attention.1} parent=11 // pred_check
          %p133 = pneg %p71
        $region14: #{spatial_attention.1} parent=11 // pred_check_branch
          %135 = sbr.rel (%p133) target = $region16
        $region15: #{spatial_attention.1} parent=11 // pred_region
          %137 = vsyncadd [#allocation5], 0
          %s139 = sshll.u32 %s1, 4
          %s140 = int_to_ptr.vmem [resolvable:$true] %s139
          %142 = dma.vmem_to_smem %s140, 16, [#allocation4], [#allocation5]
        $region16: #{spatial_attention.1} parent=11 // pred_fallthru
          _
        // Predicated region
        $region17: #{spatial_attention.1} parent=11 // pred_check
          %p143 = pneg %p92
        $region18: #{spatial_attention.1} parent=11 // pred_check_branch
          %145 = sbr.rel (%p143) target = $region20
        $region19: #{spatial_attention.1} parent=11 // pred_region
          _
        $region20: #{spatial_attention.1} parent=11 // pred_fallthru
          _
      $region12: #{spatial_attention.1} parent=5 // pred_fallthru
        _
      %p146 = scmp.lt.s32.totalorder %s10, 2
      // Predicated region
      $region21: #{spatial_attention.1} parent=5 // pred_check
        %p147 = pneg %p146
      $region22: #{spatial_attention.1} parent=5 // pred_check_branch
        %149 = sbr.rel (%p147) target = $region24
      $region23: #{spatial_attention.1} parent=5 // pred_region
        // Predicated region
        $region25: #{spatial_attention.1} parent=23 // pred_check
          %p150 = pneg %p44
        $region26: #{spatial_attention.1} parent=23 // pred_check_branch
          %152 = sbr.rel (%p150) target = $region28
        $region27: #{spatial_attention.1} parent=23 // pred_region
          %p153 = scmp.lt.s32.totalorder %s17, 1
          %s154 = scalar_select %p153, %s17, 1
          %p155 = scmp.lt.s32.totalorder %s18, 0
          %s156 = scalar_select %p155, %s18, 0
          %s157 = smul.addr %s156, 2
          %s158 = smul.addr %s154, 2
          %s159 = sadd.s32 %s157, %s158
          %s160 = smul.addr %s159, 4
          %s161 = scalar_lea.vmem %s0, %s160
        $region28: #{spatial_attention.1} parent=23 // pred_fallthru
          _
      $region24: #{spatial_attention.1} parent=5 // pred_fallthru
        _
      %p162 = scmp.le.s32.totalorder 1, %s10
      %p163 = scmp.lt.s32.totalorder %s10, 3
      %p164 = pnand %p162, %p163
      %p165 = pneg %p164
      // Predicated region
      $region29: #{spatial_attention.1} parent=5 // pred_check
        _
      $region30: #{spatial_attention.1} parent=5 // pred_check_branch
        %167 = sbr.rel (%p164) target = $region32
      $region31: #{spatial_attention.1} parent=5 // pred_region
        %s168 = ssub.s32 %s10, 1
        // Predicated region
        $region33: #{spatial_attention.1} parent=31 // pred_check
          %p169 = pneg %p71
        $region34: #{spatial_attention.1} parent=31 // pred_check_branch
          %171 = sbr.rel (%p169) target = $region36
        $region35: #{spatial_attention.1} parent=31 // pred_region
          %173 = dma.done [#allocation5], 16
        $region36: #{spatial_attention.1} parent=31 // pred_fallthru
          _
        %174 = sfence
        %p175 = scmp.lt.s32.totalorder %s19, 1
        %s176 = scalar_select %p175, %s19, 1
        %p177 = scmp.lt.s32.totalorder %s20, 0
        %s178 = scalar_select %p177, %s20, 0
        %s179 = smul.addr %s178, 2
        %s180 = smul.addr %s176, 2
        %s181 = sadd.s32 %s179, %s180
        %s182 = smul.addr %s181, 4
        %s183 = scalar_lea.vmem %s0, %s182
        %p184 = pneg %p50
        %p185 = pneg %p47
        %p186 = pneg %p71
        %p187 = pneg %p68
        %p188 = pneg %p92
        %p189 = pneg %p89
        %p190 = pneg %p118
        %p191 = pneg %p115
        %p192 = scmp.lt.s32.totalorder %s19, 1
        %s193 = scalar_select %p192, %s19, 1
        %s194 = smul.addr %s193, 2
        %s195 = scalar_lea.vmem %s3, %s194
        %p196 = scmp.lt.s32.totalorder %s19, 1
        %s197 = scalar_select %p196, %s19, 1
        %p198 = scmp.lt.s32.totalorder %s20, 0
        %s199 = scalar_select %p198, %s20, 0
        %s200 = smul.addr %s199, 2
        %s201 = smul.addr %s197, 2
        %s202 = sadd.s32 %s200, %s201
        %s203 = smul.addr %s202, 4
        %s204 = scalar_lea.vmem %s0, %s203
        %p205 = scmp.lt.s32.totalorder %s19, 1
        %s206 = scalar_select %p205, %s19, 1
        %s207 = smul.addr %s206, 2
        %s208 = scalar_lea.vmem %s3, %s207
        %v209 = vld [vmem:[%s204] sm:$0xff]
        %211 = vst [vmem:[#allocation1] ss:$2 sm:$0xff] %v209
        %v212 = vld.sshfl [vmem:[#allocation1] sm:$0xff pattern:$0x75316420]
        %v213 = vld.sshfl [vmem:[#allocation1 + $0x8] sm:$0xff pattern:$0x75316420]
        %vm216 = vcmask 1043456
        %v217 = vsel %vm216, %v212, 0.0
        %v218 = vrot.slane %v217, 4
        %v219 = vadd.f32 %v217, %v218
        %v220 = vrot.slane %v219, 2
        %v221 = vadd.f32 %v219, %v220
        %v222 = vrot.slane %v221, 1
        %v223 = vadd.f32 %v221, %v222
        %v224 = vsel %vm216, %v213, 0.0
        %v225 = vrot.slane %v224, 4
        %v226 = vadd.f32 %v224, %v225
        %v227 = vrot.slane %v226, 2
        %v228 = vadd.f32 %v226, %v227
        %v229 = vrot.slane %v228, 1
        %v230 = vadd.f32 %v228, %v229
        %231 = vst [vmem:[#allocation1] ss:$2 sm:$0xff] %v209
        %v232 = vld.sshfl [vmem:[#allocation1] sm:$0xff pattern:$0x75316420]
        %v233 = vld.sshfl [vmem:[#allocation1 + $0x8] sm:$0xff pattern:$0x75316420]
        %v236 = vsel %vm216, %v232, -inf
        %v237 = vrot.slane %v236, 4
        %v238 = vmax.f32 %v236, %v237
        %v239 = vrot.slane %v238, 2
        %v240 = vmax.f32 %v238, %v239
        %v241 = vrot.slane %v240, 1
        %v242 = vmax.f32 %v240, %v241
        %v243 = vsel %vm216, %v233, -inf
        %v244 = vrot.slane %v243, 4
        %v245 = vmax.f32 %v243, %v244
        %v246 = vrot.slane %v245, 2
        %v247 = vmax.f32 %v245, %v246
        %v248 = vrot.slane %v247, 1
        %v249 = vmax.f32 %v247, %v248
        %p250 = scmp.eq.s32.totalorder %s20, 0
        // Predicated region
        $region37: #{spatial_attention.1} parent=31 // pred_check
          %p251 = pneg %p250
        $region38: #{spatial_attention.1} parent=31 // pred_check_branch
          %253 = sbr.rel (%p251) target = $region40
        $region39: #{spatial_attention.1} parent=31 // pred_region
          %v256 = vrot.slane %v230, 7
          %vm257 = vcmask 1040384
          %v258 = vsel %vm257, %v223, %v256
          %v260 = vlaneseq
          %vm261 = vcmp.ge.s32.totalorder %v260, 0
          %vm262 = vcmp.lt.s32.totalorder %v260, 256
          %vm263 = vmand %vm261, %vm262
          %264 = vst.msk [vmem:[#allocation2] sm:$0x3] %vm263, %v258
          %v267 = vrot.slane %v249, 7
          %v268 = vsel %vm257, %v242, %v267
          %270 = vst.msk [vmem:[#allocation3] sm:$0x3] %vm263, %v268
        $region40: #{spatial_attention.1} parent=31 // pred_fallthru
          _
        %p271 = scmp.gt.s32.totalorder %s20, 0
        // Predicated region
        $region41: #{spatial_attention.1} parent=31 // pred_check
          %p272 = pneg %p271
        $region42: #{spatial_attention.1} parent=31 // pred_check_branch
          %274 = sbr.rel (%p272) target = $region44
        $region43: #{spatial_attention.1} parent=31 // pred_region
          %v275 = vld [vmem:[#allocation2] sm:$0x3]
          %v278 = vrot.slane %v230, 7
          %vm279 = vcmask 1040384
          %v280 = vsel %vm279, %v223, %v278
          %v282 = vadd.f32 %v275, %v280
          %v283 = vlaneseq
          %vm284 = vcmp.ge.s32.totalorder %v283, 0
          %vm285 = vcmp.lt.s32.totalorder %v283, 256
          %vm286 = vmand %vm284, %vm285
          %287 = vst.msk [vmem:[#allocation2] sm:$0x3] %vm286, %v282
          %v288 = vld [vmem:[#allocation3] sm:$0x3]
          %v291 = vrot.slane %v249, 7
          %v292 = vsel %vm279, %v242, %v291
          %v294 = vmax.f32 %v288, %v292
          %295 = vst.msk [vmem:[#allocation3] sm:$0x3] %vm286, %v294
        $region44: #{spatial_attention.1} parent=31 // pred_fallthru
          _
        // Predicated region
        $region45: #{spatial_attention.1} parent=31 // pred_check
          %p296 = pneg %p250
        $region46: #{spatial_attention.1} parent=31 // pred_check_branch
          %298 = sbr.rel (%p296) target = $region48
        $region47: #{spatial_attention.1} parent=31 // pred_region
          %v299 = vld [vmem:[#allocation2] sm:$0x3]
          %v300 = vld [vmem:[#allocation3] sm:$0x3]
          %v301 = vld [vmem:[%s2] sm:$0x3]
          %v302 = vlaneseq
          %v303 = vand.u32 %v302, 127
          %v304 = vadd.s32 %v303, 128
          %v306 = vperm.slane %v299, 0
          %v307 = vperm.slane %v299, 1
          %310 = vrot.lane.b32.xlu0 %v306, 3
          %v311 = vpop.permute.xlu0 %310
          %312 = vrot.lane.b32.xlu0 %v307, 3
          %v313 = vpop.permute.xlu0 %312
          %vm314 = vcmp.lt.s32.totalorder %v303, 3
          %v315 = vsel %vm314, %v311, %v313
          %v316 = vsel %vm314, %v313, %v311
          %v318 = vperm.slane %v300, 0
          %v319 = vperm.slane %v300, 1
          %322 = vrot.lane.b32.xlu0 %v318, 3
          %v323 = vpop.permute.xlu0 %322
          %324 = vrot.lane.b32.xlu0 %v319, 3
          %v325 = vpop.permute.xlu0 %324
          %v326 = vsel %vm314, %v323, %v325
          %v327 = vsel %vm314, %v325, %v323
          %v328 = vadd.s32 %v301, 4294967293
          %vm329 = vcmp.ge.s32.totalorder %v328, 0
          %vm330 = vcmp.lt.s32.totalorder %v328, 16
          %vm331 = vmand %vm329, %vm330
          %v334 = vrot.slane %v315, 7
          %vm335 = vcmask 1040384
          %v336 = vsel %vm335, %v316, %v334
          %v338 = vsel %vm331, %v336, 0.0
          %v341 = vrot.slane %v326, 7
          %v342 = vsel %vm335, %v327, %v341
          %v344 = vsel %vm331, %v342, 0.0
          %345 = vrot.lane.b32.xlu0 %v306, 2
          %v346 = vpop.permute.xlu0 %345
          %347 = vrot.lane.b32.xlu0 %v307, 2
          %v348 = vpop.permute.xlu0 %347
          %vm349 = vcmp.lt.s32.totalorder %v303, 2
          %v350 = vsel %vm349, %v346, %v348
          %v351 = vsel %vm349, %v348, %v346
          %352 = vrot.lane.b32.xlu0 %v318, 2
          %v353 = vpop.permute.xlu0 %352
          %354 = vrot.lane.b32.xlu0 %v319, 2
          %v355 = vpop.permute.xlu0 %354
          %v356 = vsel %vm349, %v353, %v355
          %v357 = vsel %vm349, %v355, %v353
          %v358 = vadd.s32 %v301, 4294967294
          %vm359 = vcmp.ge.s32.totalorder %v358, 0
          %vm360 = vcmp.lt.s32.totalorder %v358, 16
          %vm361 = vmand %vm359, %vm360
          %v364 = vrot.slane %v350, 7
          %v365 = vsel %vm335, %v351, %v364
          %v367 = vsel %vm361, %v365, 0.0
          %v370 = vrot.slane %v356, 7
          %v371 = vsel %vm335, %v357, %v370
          %v373 = vsel %vm361, %v371, 0.0
          %374 = vrot.lane.b32.xlu0 %v306, 1
          %v375 = vpop.permute.xlu0 %374
          %376 = vrot.lane.b32.xlu0 %v307, 1
          %v377 = vpop.permute.xlu0 %376
          %vm378 = vcmp.lt.s32.totalorder %v303, 1
          %v379 = vsel %vm378, %v375, %v377
          %v380 = vsel %vm378, %v377, %v375
          %381 = vrot.lane.b32.xlu0 %v318, 1
          %v382 = vpop.permute.xlu0 %381
          %383 = vrot.lane.b32.xlu0 %v319, 1
          %v384 = vpop.permute.xlu0 %383
          %v385 = vsel %vm378, %v382, %v384
          %v386 = vsel %vm378, %v384, %v382
          %v387 = vadd.s32 %v301, 4294967295
          %vm388 = vcmp.ge.s32.totalorder %v387, 0
          %vm389 = vcmp.lt.s32.totalorder %v387, 16
          %vm390 = vmand %vm388, %vm389
          %v393 = vrot.slane %v379, 7
          %v394 = vsel %vm335, %v380, %v393
          %v396 = vsel %vm390, %v394, 0.0
          %v399 = vrot.slane %v385, 7
          %v400 = vsel %vm335, %v386, %v399
          %v402 = vsel %vm390, %v400, 0.0
          %403 = vrot.lane.b32.xlu0 %v306, 127
          %v404 = vpop.permute.xlu0 %403
          %405 = vrot.lane.b32.xlu0 %v307, 127
          %v406 = vpop.permute.xlu0 %405
          %vm407 = vcmp.lt.s32.totalorder %v303, 127
          %v408 = vsel %vm407, %v404, %v406
          %v409 = vsel %vm407, %v406, %v404
          %410 = vrot.lane.b32.xlu0 %v318, 127
          %v411 = vpop.permute.xlu0 %410
          %412 = vrot.lane.b32.xlu0 %v319, 127
          %v413 = vpop.permute.xlu0 %412
          %v414 = vsel %vm407, %v411, %v413
          %v415 = vsel %vm407, %v413, %v411
          %v416 = vadd.s32 %v301, 1
          %vm417 = vcmp.ge.s32.totalorder %v416, 0
          %vm418 = vcmp.lt.s32.totalorder %v416, 16
          %vm419 = vmand %vm417, %vm418
          %v422 = vrot.slane %v409, 7
          %v423 = vsel %vm335, %v408, %v422
          %v425 = vsel %vm419, %v423, 0.0
          %v428 = vrot.slane %v415, 7
          %v429 = vsel %vm335, %v414, %v428
          %v431 = vsel %vm419, %v429, 0.0
          %432 = vrot.lane.b32.xlu0 %v306, 126
          %v433 = vpop.permute.xlu0 %432
          %434 = vrot.lane.b32.xlu0 %v307, 126
          %v435 = vpop.permute.xlu0 %434
          %vm436 = vcmp.lt.s32.totalorder %v303, 126
          %v437 = vsel %vm436, %v433, %v435
          %v438 = vsel %vm436, %v435, %v433
          %439 = vrot.lane.b32.xlu0 %v318, 126
          %v440 = vpop.permute.xlu0 %439
          %441 = vrot.lane.b32.xlu0 %v319, 126
          %v442 = vpop.permute.xlu0 %441
          %v443 = vsel %vm436, %v440, %v442
          %v444 = vsel %vm436, %v442, %v440
          %v445 = vadd.s32 %v301, 2
          %vm446 = vcmp.ge.s32.totalorder %v445, 0
          %vm447 = vcmp.lt.s32.totalorder %v445, 16
          %vm448 = vmand %vm446, %vm447
          %v451 = vrot.slane %v438, 7
          %v452 = vsel %vm335, %v437, %v451
          %v454 = vsel %vm448, %v452, 0.0
          %v457 = vrot.slane %v444, 7
          %v458 = vsel %vm335, %v443, %v457
          %v460 = vsel %vm448, %v458, 0.0
          %461 = vrot.lane.b32.xlu0 %v306, 125
          %v462 = vpop.permute.xlu0 %461
          %463 = vrot.lane.b32.xlu0 %v307, 125
          %v464 = vpop.permute.xlu0 %463
          %vm465 = vcmp.lt.s32.totalorder %v303, 125
          %v466 = vsel %vm465, %v462, %v464
          %v467 = vsel %vm465, %v464, %v462
          %468 = vrot.lane.b32.xlu0 %v318, 125
          %v469 = vpop.permute.xlu0 %468
          %470 = vrot.lane.b32.xlu0 %v319, 125
          %v471 = vpop.permute.xlu0 %470
          %v472 = vsel %vm465, %v469, %v471
          %v473 = vsel %vm465, %v471, %v469
          %v474 = vadd.s32 %v301, 3
          %vm475 = vcmp.ge.s32.totalorder %v474, 0
          %vm476 = vcmp.lt.s32.totalorder %v474, 16
          %vm477 = vmand %vm475, %vm476
          %v480 = vrot.slane %v467, 7
          %v481 = vsel %vm335, %v466, %v480
          %v483 = vsel %vm477, %v481, 0.0
          %v486 = vrot.slane %v473, 7
          %v487 = vsel %vm335, %v472, %v486
          %v489 = vsel %vm477, %v487, 0.0
          %s490 = sld [smem:[#allocation4]]
          %v491 = vstv %s490
          %v492 = vmul.f32 %v491, %v338
          %v493 = vadd.f32 %v492, 0.0
          %s494 = sld [smem:[#allocation4 + $0x31]]
          %v495 = vstv %s494
          %v496 = vmul.f32 %v495, %v344
          %v497 = vadd.f32 %v496, 0.0
          %s498 = sld [smem:[#allocation4 + $0x1]]
          %v499 = vstv %s498
          %v500 = vmul.f32 %v499, %v367
          %v501 = vadd.f32 %v493, %v500
          %s502 = sld [smem:[#allocation4 + $0x32]]
          %v503 = vstv %s502
          %v504 = vmul.f32 %v503, %v373
          %v505 = vadd.f32 %v497, %v504
          %s506 = sld [smem:[#allocation4 + $0x2]]
          %v507 = vstv %s506
          %v508 = vmul.f32 %v507, %v396
          %v509 = vadd.f32 %v501, %v508
          %s510 = sld [smem:[#allocation4 + $0x33]]
          %v511 = vstv %s510
          %v512 = vmul.f32 %v511, %v402
          %v513 = vadd.f32 %v505, %v512
          %s514 = sld [smem:[#allocation4 + $0x3]]
          %v515 = vstv %s514
          %v516 = vmul.f32 %v515, %v299
          %v517 = vadd.f32 %v509, %v516
          %s518 = sld [smem:[#allocation4 + $0x34]]
          %v519 = vstv %s518
          %v520 = vmul.f32 %v519, %v300
          %v521 = vadd.f32 %v513, %v520
          %s522 = sld [smem:[#allocation4 + $0x4]]
          %v523 = vstv %s522
          %v524 = vmul.f32 %v523, %v425
          %v525 = vadd.f32 %v517, %v524
          %s526 = sld [smem:[#allocation4 + $0x35]]
          %v527 = vstv %s526
          %v528 = vmul.f32 %v527, %v431
          %v529 = vadd.f32 %v521, %v528
          %s530 = sld [smem:[#allocation4 + $0x5]]
          %v531 = vstv %s530
          %v532 = vmul.f32 %v531, %v454
          %v533 = vadd.f32 %v525, %v532
          %s534 = sld [smem:[#allocation4 + $0x36]]
          %v535 = vstv %s534
          %v536 = vmul.f32 %v535, %v460
          %v537 = vadd.f32 %v529, %v536
          %s538 = sld [smem:[#allocation4 + $0x6]]
          %v539 = vstv %s538
          %v540 = vmul.f32 %v539, %v483
          %v541 = vadd.f32 %v533, %v540
          %s542 = sld [smem:[#allocation4 + $0x37]]
          %v543 = vstv %s542
          %v544 = vmul.f32 %v543, %v489
          %v545 = vadd.f32 %v537, %v544
          %v546 = vadd.f32 %v541, %v545
          %v548 = vperm.slane %v546, 0
          %v549 = vperm.slane %v546, 1
          %552 = vrot.lane.b32.xlu0 %v548, 48
          %v553 = vpop.permute.xlu0 %552
          %554 = vrot.lane.b32.xlu0 %v549, 48
          %v555 = vpop.permute.xlu0 %554
          %vm556 = vcmp.lt.s32.totalorder %v303, 48
          %v557 = vsel %vm556, %v553, %v555
          %v558 = vsel %vm556, %v555, %v553
          %v559 = vadd.s32 %v303, 4294967248
          %v560 = vadd.s32 %v304, 4294967248
          %vm561 = vcmp.ge.s32.totalorder %v559, 0
          %vm562 = vcmp.ge.s32.totalorder %v560, 0
          %vm563 = vcmp.lt.s32.totalorder %v559, 256
          %vm564 = vcmp.lt.s32.totalorder %v560, 256
          %vm565 = vmand %vm561, %vm563
          %vm566 = vmand %vm562, %vm564
          %v567 = vsel %vm565, %v558, 0.0
          %v568 = vsel %vm566, %v557, 0.0
          %v569 = vadd.f32 %v567, 0.0
          %v570 = vadd.f32 %v568, 0.0
          %s571 = sld [smem:[#allocation4 + $0x7]]
          %v572 = vstv %s571
          %v573 = vmul.f32 %v572, %v338
          %v574 = vadd.f32 %v573, 0.0
          %s575 = sld [smem:[#allocation4 + $0x38]]
          %v576 = vstv %s575
          %v577 = vmul.f32 %v576, %v344
          %v578 = vadd.f32 %v577, 0.0
          %s579 = sld [smem:[#allocation4 + $0x8]]
          %v580 = vstv %s579
          %v581 = vmul.f32 %v580, %v367
          %v582 = vadd.f32 %v574, %v581
          %s583 = sld [smem:[#allocation4 + $0x39]]
          %v584 = vstv %s583
          %v585 = vmul.f32 %v584, %v373
          %v586 = vadd.f32 %v578, %v585
          %s587 = sld [smem:[#allocation4 + $0x9]]
          %v588 = vstv %s587
          %v589 = vmul.f32 %v588, %v396
          %v590 = vadd.f32 %v582, %v589
          %s591 = sld [smem:[#allocation4 + $0x3a]]
          %v592 = vstv %s591
          %v593 = vmul.f32 %v592, %v402
          %v594 = vadd.f32 %v586, %v593
          %s595 = sld [smem:[#allocation4 + $0xa]]
          %v596 = vstv %s595
          %v597 = vmul.f32 %v596, %v299
          %v598 = vadd.f32 %v590, %v597
          %s599 = sld [smem:[#allocation4 + $0x3b]]
          %v600 = vstv %s599
          %v601 = vmul.f32 %v600, %v300
          %v602 = vadd.f32 %v594, %v601
          %s603 = sld [smem:[#allocation4 + $0xb]]
          %v604 = vstv %s603
          %v605 = vmul.f32 %v604, %v425
          %v606 = vadd.f32 %v598, %v605
          %s607 = sld [smem:[#allocation4 + $0x3c]]
          %v608 = vstv %s607
          %v609 = vmul.f32 %v608, %v431
          %v610 = vadd.f32 %v602, %v609
          %s611 = sld [smem:[#allocation4 + $0xc]]
          %v612 = vstv %s611
          %v613 = vmul.f32 %v612, %v454
          %v614 = vadd.f32 %v606, %v613
          %s615 = sld [smem:[#allocation4 + $0x3d]]
          %v616 = vstv %s615
          %v617 = vmul.f32 %v616, %v460
          %v618 = vadd.f32 %v610, %v617
          %s619 = sld [smem:[#allocation4 + $0xd]]
          %v620 = vstv %s619
          %v621 = vmul.f32 %v620, %v483
          %v622 = vadd.f32 %v614, %v621
          %s623 = sld [smem:[#allocation4 + $0x3e]]
          %v624 = vstv %s623
          %v625 = vmul.f32 %v624, %v489
          %v626 = vadd.f32 %v618, %v625
          %v627 = vadd.f32 %v622, %v626
          %v629 = vperm.slane %v627, 0
          %v630 = vperm.slane %v627, 1
          %633 = vrot.lane.b32.xlu0 %v629, 32
          %v634 = vpop.permute.xlu0 %633
          %635 = vrot.lane.b32.xlu0 %v630, 32
          %v636 = vpop.permute.xlu0 %635
          %vm637 = vcmp.lt.s32.totalorder %v303, 32
          %v638 = vsel %vm637, %v634, %v636
          %v639 = vsel %vm637, %v636, %v634
          %v640 = vadd.s32 %v303, 4294967264
          %v641 = vadd.s32 %v304, 4294967264
          %vm642 = vcmp.ge.s32.totalorder %v640, 0
          %vm643 = vcmp.ge.s32.totalorder %v641, 0
          %vm644 = vcmp.lt.s32.totalorder %v640, 256
          %vm645 = vcmp.lt.s32.totalorder %v641, 256
          %vm646 = vmand %vm642, %vm644
          %vm647 = vmand %vm643, %vm645
          %v648 = vsel %vm646, %v639, 0.0
          %v649 = vsel %vm647, %v638, 0.0
          %v650 = vadd.f32 %v569, %v648
          %v651 = vadd.f32 %v570, %v649
          %s652 = sld [smem:[#allocation4 + $0xe]]
          %v653 = vstv %s652
          %v654 = vmul.f32 %v653, %v338
          %v655 = vadd.f32 %v654, 0.0
          %s656 = sld [smem:[#allocation4 + $0x3f]]
          %v657 = vstv %s656
          %v658 = vmul.f32 %v657, %v344
          %v659 = vadd.f32 %v658, 0.0
          %s660 = sld [smem:[#allocation4 + $0xf]]
          %v661 = vstv %s660
          %v662 = vmul.f32 %v661, %v367
          %v663 = vadd.f32 %v655, %v662
          %s664 = sld [smem:[#allocation4 + $0x40]]
          %v665 = vstv %s664
          %v666 = vmul.f32 %v665, %v373
          %v667 = vadd.f32 %v659, %v666
          %s668 = sld [smem:[#allocation4 + $0x10]]
          %v669 = vstv %s668
          %v670 = vmul.f32 %v669, %v396
          %v671 = vadd.f32 %v663, %v670
          %s672 = sld [smem:[#allocation4 + $0x41]]
          %v673 = vstv %s672
          %v674 = vmul.f32 %v673, %v402
          %v675 = vadd.f32 %v667, %v674
          %s676 = sld [smem:[#allocation4 + $0x11]]
          %v677 = vstv %s676
          %v678 = vmul.f32 %v677, %v299
          %v679 = vadd.f32 %v671, %v678
          %s680 = sld [smem:[#allocation4 + $0x42]]
          %v681 = vstv %s680
          %v682 = vmul.f32 %v681, %v300
          %v683 = vadd.f32 %v675, %v682
          %s684 = sld [smem:[#allocation4 + $0x12]]
          %v685 = vstv %s684
          %v686 = vmul.f32 %v685, %v425
          %v687 = vadd.f32 %v679, %v686
          %s688 = sld [smem:[#allocation4 + $0x43]]
          %v689 = vstv %s688
          %v690 = vmul.f32 %v689, %v431
          %v691 = vadd.f32 %v683, %v690
          %s692 = sld [smem:[#allocation4 + $0x13]]
          %v693 = vstv %s692
          %v694 = vmul.f32 %v693, %v454
          %v695 = vadd.f32 %v687, %v694
          %s696 = sld [smem:[#allocation4 + $0x44]]
          %v697 = vstv %s696
          %v698 = vmul.f32 %v697, %v460
          %v699 = vadd.f32 %v691, %v698
          %s700 = sld [smem:[#allocation4 + $0x14]]
          %v701 = vstv %s700
          %v702 = vmul.f32 %v701, %v483
          %v703 = vadd.f32 %v695, %v702
          %s704 = sld [smem:[#allocation4 + $0x45]]
          %v705 = vstv %s704
          %v706 = vmul.f32 %v705, %v489
          %v707 = vadd.f32 %v699, %v706
          %v708 = vadd.f32 %v703, %v707
          %v710 = vperm.slane %v708, 0
          %v711 = vperm.slane %v708, 1
          %714 = vrot.lane.b32.xlu0 %v710, 16
          %v715 = vpop.permute.xlu0 %714
          %716 = vrot.lane.b32.xlu0 %v711, 16
          %v717 = vpop.permute.xlu0 %716
          %vm718 = vcmp.lt.s32.totalorder %v303, 16
          %v719 = vsel %vm718, %v715, %v717
          %v720 = vsel %vm718, %v717, %v715
          %v721 = vadd.s32 %v303, 4294967280
          %v722 = vadd.s32 %v304, 4294967280
          %vm723 = vcmp.ge.s32.totalorder %v721, 0
          %vm724 = vcmp.ge.s32.totalorder %v722, 0
          %vm725 = vcmp.lt.s32.totalorder %v721, 256
          %vm726 = vcmp.lt.s32.totalorder %v722, 256
          %vm727 = vmand %vm723, %vm725
          %vm728 = vmand %vm724, %vm726
          %v729 = vsel %vm727, %v720, 0.0
          %v730 = vsel %vm728, %v719, 0.0
          %v731 = vadd.f32 %v650, %v729
          %v732 = vadd.f32 %v651, %v730
          %s733 = sld [smem:[#allocation4 + $0x15]]
          %v734 = vstv %s733
          %v735 = vmul.f32 %v734, %v338
          %v736 = vadd.f32 %v735, 0.0
          %s737 = sld [smem:[#allocation4 + $0x46]]
          %v738 = vstv %s737
          %v739 = vmul.f32 %v738, %v344
          %v740 = vadd.f32 %v739, 0.0
          %s741 = sld [smem:[#allocation4 + $0x16]]
          %v742 = vstv %s741
          %v743 = vmul.f32 %v742, %v367
          %v744 = vadd.f32 %v736, %v743
          %s745 = sld [smem:[#allocation4 + $0x47]]
          %v746 = vstv %s745
          %v747 = vmul.f32 %v746, %v373
          %v748 = vadd.f32 %v740, %v747
          %s749 = sld [smem:[#allocation4 + $0x17]]
          %v750 = vstv %s749
          %v751 = vmul.f32 %v750, %v396
          %v752 = vadd.f32 %v744, %v751
          %s753 = sld [smem:[#allocation4 + $0x48]]
          %v754 = vstv %s753
          %v755 = vmul.f32 %v754, %v402
          %v756 = vadd.f32 %v748, %v755
          %s757 = sld [smem:[#allocation4 + $0x18]]
          %v758 = vstv %s757
          %v759 = vmul.f32 %v758, %v299
          %v760 = vadd.f32 %v752, %v759
          %s761 = sld [smem:[#allocation4 + $0x49]]
          %v762 = vstv %s761
          %v763 = vmul.f32 %v762, %v300
          %v764 = vadd.f32 %v756, %v763
          %s765 = sld [smem:[#allocation4 + $0x19]]
          %v766 = vstv %s765
          %v767 = vmul.f32 %v766, %v425
          %v768 = vadd.f32 %v760, %v767
          %s769 = sld [smem:[#allocation4 + $0x4a]]
          %v770 = vstv %s769
          %v771 = vmul.f32 %v770, %v431
          %v772 = vadd.f32 %v764, %v771
          %s773 = sld [smem:[#allocation4 + $0x1a]]
          %v774 = vstv %s773
          %v775 = vmul.f32 %v774, %v454
          %v776 = vadd.f32 %v768, %v775
          %s777 = sld [smem:[#allocation4 + $0x4b]]
          %v778 = vstv %s777
          %v779 = vmul.f32 %v778, %v460
          %v780 = vadd.f32 %v772, %v779
          %s781 = sld [smem:[#allocation4 + $0x1b]]
          %v782 = vstv %s781
          %v783 = vmul.f32 %v782, %v483
          %v784 = vadd.f32 %v776, %v783
          %s785 = sld [smem:[#allocation4 + $0x4c]]
          %v786 = vstv %s785
          %v787 = vmul.f32 %v786, %v489
          %v788 = vadd.f32 %v780, %v787
          %v789 = vadd.f32 %v784, %v788
          %vm790 = vcmp.ge.s32.totalorder %v303, 0
          %vm791 = vcmp.ge.s32.totalorder %v304, 0
          %vm792 = vcmp.lt.s32.totalorder %v303, 256
          %vm793 = vcmp.lt.s32.totalorder %v304, 256
          %vm794 = vmand %vm790, %vm792
          %vm795 = vmand %vm791, %vm793
          %v797 = vperm.slane %v789, 0
          %v798 = vperm.slane %v789, 1
          %v801 = vsel %vm794, %v797, 0.0
          %v802 = vsel %vm795, %v798, 0.0
          %v803 = vadd.f32 %v731, %v801
          %v804 = vadd.f32 %v732, %v802
          %s805 = sld [smem:[#allocation4 + $0x1c]]
          %v806 = vstv %s805
          %v807 = vmul.f32 %v806, %v338
          %v808 = vadd.f32 %v807, 0.0
          %s809 = sld [smem:[#allocation4 + $0x4d]]
          %v810 = vstv %s809
          %v811 = vmul.f32 %v810, %v344
          %v812 = vadd.f32 %v811, 0.0
          %s813 = sld [smem:[#allocation4 + $0x1d]]
          %v814 = vstv %s813
          %v815 = vmul.f32 %v814, %v367
          %v816 = vadd.f32 %v808, %v815
          %s817 = sld [smem:[#allocation4 + $0x4e]]
          %v818 = vstv %s817
          %v819 = vmul.f32 %v818, %v373
          %v820 = vadd.f32 %v812, %v819
          %s821 = sld [smem:[#allocation4 + $0x1e]]
          %v822 = vstv %s821
          %v823 = vmul.f32 %v822, %v396
          %v824 = vadd.f32 %v816, %v823
          %s825 = sld [smem:[#allocation4 + $0x4f]]
          %v826 = vstv %s825
          %v827 = vmul.f32 %v826, %v402
          %v828 = vadd.f32 %v820, %v827
          %s829 = sld [smem:[#allocation4 + $0x1f]]
          %v830 = vstv %s829
          %v831 = vmul.f32 %v830, %v299
          %v832 = vadd.f32 %v824, %v831
          %s833 = sld [smem:[#allocation4 + $0x50]]
          %v834 = vstv %s833
          %v835 = vmul.f32 %v834, %v300
          %v836 = vadd.f32 %v828, %v835
          %s837 = sld [smem:[#allocation4 + $0x20]]
          %v838 = vstv %s837
          %v839 = vmul.f32 %v838, %v425
          %v840 = vadd.f32 %v832, %v839
          %s841 = sld [smem:[#allocation4 + $0x51]]
          %v842 = vstv %s841
          %v843 = vmul.f32 %v842, %v431
          %v844 = vadd.f32 %v836, %v843
          %s845 = sld [smem:[#allocation4 + $0x21]]
          %v846 = vstv %s845
          %v847 = vmul.f32 %v846, %v454
          %v848 = vadd.f32 %v840, %v847
          %s849 = sld [smem:[#allocation4 + $0x52]]
          %v850 = vstv %s849
          %v851 = vmul.f32 %v850, %v460
          %v852 = vadd.f32 %v844, %v851
          %s853 = sld [smem:[#allocation4 + $0x22]]
          %v854 = vstv %s853
          %v855 = vmul.f32 %v854, %v483
          %v856 = vadd.f32 %v848, %v855
          %s857 = sld [smem:[#allocation4 + $0x53]]
          %v858 = vstv %s857
          %v859 = vmul.f32 %v858, %v489
          %v860 = vadd.f32 %v852, %v859
          %v861 = vadd.f32 %v856, %v860
          %v863 = vperm.slane %v861, 0
          %v864 = vperm.slane %v861, 1
          %867 = vrot.lane.b32.xlu0 %v863, 112
          %v868 = vpop.permute.xlu0 %867
          %869 = vrot.lane.b32.xlu0 %v864, 112
          %v870 = vpop.permute.xlu0 %869
          %vm871 = vcmp.lt.s32.totalorder %v303, 112
          %v872 = vsel %vm871, %v868, %v870
          %v873 = vsel %vm871, %v870, %v868
          %v874 = vadd.s32 %v303, 16
          %v875 = vadd.s32 %v304, 16
          %vm876 = vcmp.ge.s32.totalorder %v874, 0
          %vm877 = vcmp.ge.s32.totalorder %v875, 0
          %vm878 = vcmp.lt.s32.totalorder %v874, 256
          %vm879 = vcmp.lt.s32.totalorder %v875, 256
          %vm880 = vmand %vm876, %vm878
          %vm881 = vmand %vm877, %vm879
          %v882 = vsel %vm880, %v872, 0.0
          %v883 = vsel %vm881, %v873, 0.0
          %v884 = vadd.f32 %v803, %v882
          %v885 = vadd.f32 %v804, %v883
          %s886 = sld [smem:[#allocation4 + $0x23]]
          %v887 = vstv %s886
          %v888 = vmul.f32 %v887, %v338
          %v889 = vadd.f32 %v888, 0.0
          %s890 = sld [smem:[#allocation4 + $0x54]]
          %v891 = vstv %s890
          %v892 = vmul.f32 %v891, %v344
          %v893 = vadd.f32 %v892, 0.0
          %s894 = sld [smem:[#allocation4 + $0x24]]
          %v895 = vstv %s894
          %v896 = vmul.f32 %v895, %v367
          %v897 = vadd.f32 %v889, %v896
          %s898 = sld [smem:[#allocation4 + $0x55]]
          %v899 = vstv %s898
          %v900 = vmul.f32 %v899, %v373
          %v901 = vadd.f32 %v893, %v900
          %s902 = sld [smem:[#allocation4 + $0x25]]
          %v903 = vstv %s902
          %v904 = vmul.f32 %v903, %v396
          %v905 = vadd.f32 %v897, %v904
          %s906 = sld [smem:[#allocation4 + $0x56]]
          %v907 = vstv %s906
          %v908 = vmul.f32 %v907, %v402
          %v909 = vadd.f32 %v901, %v908
          %s910 = sld [smem:[#allocation4 + $0x26]]
          %v911 = vstv %s910
          %v912 = vmul.f32 %v911, %v299
          %v913 = vadd.f32 %v905, %v912
          %s914 = sld [smem:[#allocation4 + $0x57]]
          %v915 = vstv %s914
          %v916 = vmul.f32 %v915, %v300
          %v917 = vadd.f32 %v909, %v916
          %s918 = sld [smem:[#allocation4 + $0x27]]
          %v919 = vstv %s918
          %v920 = vmul.f32 %v919, %v425
          %v921 = vadd.f32 %v913, %v920
          %s922 = sld [smem:[#allocation4 + $0x58]]
          %v923 = vstv %s922
          %v924 = vmul.f32 %v923, %v431
          %v925 = vadd.f32 %v917, %v924
          %s926 = sld [smem:[#allocation4 + $0x28]]
          %v927 = vstv %s926
          %v928 = vmul.f32 %v927, %v454
          %v929 = vadd.f32 %v921, %v928
          %s930 = sld [smem:[#allocation4 + $0x59]]
          %v931 = vstv %s930
          %v932 = vmul.f32 %v931, %v460
          %v933 = vadd.f32 %v925, %v932
          %s934 = sld [smem:[#allocation4 + $0x29]]
          %v935 = vstv %s934
          %v936 = vmul.f32 %v935, %v483
          %v937 = vadd.f32 %v929, %v936
          %s938 = sld [smem:[#allocation4 + $0x5a]]
          %v939 = vstv %s938
          %v940 = vmul.f32 %v939, %v489
          %v941 = vadd.f32 %v933, %v940
          %v942 = vadd.f32 %v937, %v941
          %v944 = vperm.slane %v942, 0
          %v945 = vperm.slane %v942, 1
          %948 = vrot.lane.b32.xlu0 %v944, 96
          %v949 = vpop.permute.xlu0 %948
          %950 = vrot.lane.b32.xlu0 %v945, 96
          %v951 = vpop.permute.xlu0 %950
          %vm952 = vcmp.lt.s32.totalorder %v303, 96
          %v953 = vsel %vm952, %v949, %v951
          %v954 = vsel %vm952, %v951, %v949
          %v955 = vadd.s32 %v303, 32
          %v956 = vadd.s32 %v304, 32
          %vm957 = vcmp.ge.s32.totalorder %v955, 0
          %vm958 = vcmp.ge.s32.totalorder %v956, 0
          %vm959 = vcmp.lt.s32.totalorder %v955, 256
          %vm960 = vcmp.lt.s32.totalorder %v956, 256
          %vm961 = vmand %vm957, %vm959
          %vm962 = vmand %vm958, %vm960
          %v963 = vsel %vm961, %v953, 0.0
          %v964 = vsel %vm962, %v954, 0.0
          %v965 = vadd.f32 %v884, %v963
          %v966 = vadd.f32 %v885, %v964
          %s967 = sld [smem:[#allocation4 + $0x2a]]
          %v968 = vstv %s967
          %v969 = vmul.f32 %v968, %v338
          %v970 = vadd.f32 %v969, 0.0
          %s971 = sld [smem:[#allocation4 + $0x5b]]
          %v972 = vstv %s971
          %v973 = vmul.f32 %v972, %v344
          %v974 = vadd.f32 %v973, 0.0
          %s975 = sld [smem:[#allocation4 + $0x2b]]
          %v976 = vstv %s975
          %v977 = vmul.f32 %v976, %v367
          %v978 = vadd.f32 %v970, %v977
          %s979 = sld [smem:[#allocation4 + $0x5c]]
          %v980 = vstv %s979
          %v981 = vmul.f32 %v980, %v373
          %v982 = vadd.f32 %v974, %v981
          %s983 = sld [smem:[#allocation4 + $0x2c]]
          %v984 = vstv %s983
          %v985 = vmul.f32 %v984, %v396
          %v986 = vadd.f32 %v978, %v985
          %s987 = sld [smem:[#allocation4 + $0x5d]]
          %v988 = vstv %s987
          %v989 = vmul.f32 %v988, %v402
          %v990 = vadd.f32 %v982, %v989
          %s991 = sld [smem:[#allocation4 + $0x2d]]
          %v992 = vstv %s991
          %v993 = vmul.f32 %v992, %v299
          %v994 = vadd.f32 %v986, %v993
          %s995 = sld [smem:[#allocation4 + $0x5e]]
          %v996 = vstv %s995
          %v997 = vmul.f32 %v996, %v300
          %v998 = vadd.f32 %v990, %v997
          %s999 = sld [smem:[#allocation4 + $0x2e]]
          %v1000 = vstv %s999
          %v1001 = vmul.f32 %v1000, %v425
          %v1002 = vadd.f32 %v994, %v1001
          %s1003 = sld [smem:[#allocation4 + $0x5f]]
          %v1004 = vstv %s1003
          %v1005 = vmul.f32 %v1004, %v431
          %v1006 = vadd.f32 %v998, %v1005
          %s1007 = sld [smem:[#allocation4 + $0x2f]]
          %v1008 = vstv %s1007
          %v1009 = vmul.f32 %v1008, %v454
          %v1010 = vadd.f32 %v1002, %v1009
          %s1011 = sld [smem:[#allocation4 + $0x60]]
          %v1012 = vstv %s1011
          %v1013 = vmul.f32 %v1012, %v460
          %v1014 = vadd.f32 %v1006, %v1013
          %s1015 = sld [smem:[#allocation4 + $0x30]]
          %v1016 = vstv %s1015
          %v1017 = vmul.f32 %v1016, %v483
          %v1018 = vadd.f32 %v1010, %v1017
          %s1019 = sld [smem:[#allocation4 + $0x61]]
          %v1020 = vstv %s1019
          %v1021 = vmul.f32 %v1020, %v489
          %v1022 = vadd.f32 %v1014, %v1021
          %v1023 = vadd.f32 %v1018, %v1022
          %v1025 = vperm.slane %v1023, 0
          %v1026 = vperm.slane %v1023, 1
          %1029 = vrot.lane.b32.xlu0 %v1025, 80
          %v1030 = vpop.permute.xlu0 %1029
          %1031 = vrot.lane.b32.xlu0 %v1026, 80
          %v1032 = vpop.permute.xlu0 %1031
          %vm1033 = vcmp.lt.s32.totalorder %v303, 80
          %v1034 = vsel %vm1033, %v1030, %v1032
          %v1035 = vsel %vm1033, %v1032, %v1030
          %v1036 = vadd.s32 %v303, 48
          %v1037 = vadd.s32 %v304, 48
          %vm1038 = vcmp.ge.s32.totalorder %v1036, 0
          %vm1039 = vcmp.ge.s32.totalorder %v1037, 0
          %vm1040 = vcmp.lt.s32.totalorder %v1036, 256
          %vm1041 = vcmp.lt.s32.totalorder %v1037, 256
          %vm1042 = vmand %vm1038, %vm1040
          %vm1043 = vmand %vm1039, %vm1041
          %v1044 = vsel %vm1042, %v1034, 0.0
          %v1045 = vsel %vm1043, %v1035, 0.0
          %v1046 = vadd.f32 %v965, %v1044
          %v1047 = vadd.f32 %v966, %v1045
          %v1048 = vxor.u32 %v1046, 2147483648
          %v1049 = vxor.u32 %v1047, 2147483648
          %v1050 = vmul.f32 %v1048, 1.442695
          %v1051 = vpow.pop %v1050
          %v1052 = vmul.f32 %v1049, 1.442695
          %v1053 = vpow.pop %v1052
          %v1054 = vadd.f32 %v1051, 1.0
          %v1055 = vadd.f32 %v1053, 1.0
          %v1056 = vrcp.pop %v1054
          %v1057 = vmul.f32 %v1054, %v1056
          %v1058 = vsub.f32 1.0, %v1057
          %v1059 = vmul.f32 %v1056, %v1058
          %v1060 = vadd.f32 %v1056, %v1059
          %vm1061 = vweird.f32 %v1054
          %vm1062 = vweird.f32 %v1056
          %vm1063 = vmor %vm1061, %vm1062
          %v1064 = vsel %vm1063, %v1056, %v1060
          %v1065 = vand.u32 2147483647, %v1054
          %vm1066 = vcmp.eq.f32.partialorder %v1065, 8.507059e+37
          %v1067 = vand.u32 %v1054, 2147483648
          %v1068 = vor.u32 1.1754944e-38, %v1067
          %v1069 = vsel %vm1066, %v1068, %v1064
          %v1070 = vmul.f32 1.0, %v1069
          %v1071 = vrcp.pop %v1055
          %v1072 = vmul.f32 %v1055, %v1071
          %v1073 = vsub.f32 1.0, %v1072
          %v1074 = vmul.f32 %v1071, %v1073
          %v1075 = vadd.f32 %v1071, %v1074
          %vm1076 = vweird.f32 %v1055
          %vm1077 = vweird.f32 %v1071
          %vm1078 = vmor %vm1076, %vm1077
          %v1079 = vsel %vm1078, %v1071, %v1075
          %v1080 = vand.u32 2147483647, %v1055
          %vm1081 = vcmp.eq.f32.partialorder %v1080, 8.507059e+37
          %v1082 = vand.u32 %v1055, 2147483648
          %v1083 = vor.u32 1.1754944e-38, %v1082
          %v1084 = vsel %vm1081, %v1083, %v1079
          %v1085 = vmul.f32 1.0, %v1084
          %v1088 = vrot.slane %v1085, 7
          %v1089 = vsel %vm335, %v1070, %v1088
          %v1091 = vlaneseq
          %vm1092 = vcmp.ge.s32.totalorder %v1091, 0
          %vm1093 = vcmp.lt.s32.totalorder %v1091, 256
          %vm1094 = vmand %vm1092, %vm1093
          %1095 = vst.msk [vmem:[%s208] sm:$0x3] %vm1094, %v1089
        $region48: #{spatial_attention.1} parent=31 // pred_fallthru
          _
        %p1096 = scmp.lt.s32.totalorder %s19, 1
        %s1097 = scalar_select %p1096, %s19, 1
        %s1098 = smul.addr %s1097, 2
        %s1099 = scalar_lea.vmem %s3, %s1098
        // Predicated region
        $region49: #{spatial_attention.1} parent=31 // pred_check
          %p1100 = pneg %p115
        $region50: #{spatial_attention.1} parent=31 // pred_check_branch
          %1102 = sbr.rel (%p1100) target = $region52
        $region51: #{spatial_attention.1} parent=31 // pred_region
          _
        $region52: #{spatial_attention.1} parent=31 // pred_fallthru
          _
      $region32: #{spatial_attention.1} parent=5 // pred_fallthru
        _
      %p1103 = scmp.le.s32.totalorder 2, %s10
      // Predicated region
      $region53: #{spatial_attention.1} parent=5 // pred_check
        %p1104 = pneg %p1103
      $region54: #{spatial_attention.1} parent=5 // pred_check_branch
        %1106 = sbr.rel (%p1104) target = $region56
      $region55: #{spatial_attention.1} parent=5 // pred_region
        %s1107 = ssub.s32 %s10, 2
        // Predicated region
        $region57: #{spatial_attention.1} parent=55 // pred_check
          %p1108 = pneg %p121
        $region58: #{spatial_attention.1} parent=55 // pred_check_branch
          %1110 = sbr.rel (%p1108) target = $region60
        $region59: #{spatial_attention.1} parent=55 // pred_region
          %p1111 = scmp.lt.s32.totalorder %s21, 1
          %s1112 = scalar_select %p1111, %s21, 1
          %s1113 = smul.addr %s1112, 2
          %s1114 = scalar_lea.vmem %s3, %s1113
        $region60: #{spatial_attention.1} parent=55 // pred_fallthru
          _
      $region56: #{spatial_attention.1} parent=5 // pred_fallthru
        _
    $region6: #{spatial_attention.1} parent=1 // loop_footer
      %s14 = sadd.s32 1, %s10
    $region7: #{spatial_attention.1} parent=1 // loop_footer_branch
      %9 = sbr.rel target = $region3
    $region8: #{spatial_attention.1} parent=1 // loop_exit
      _
    %1115 = vsyncpa [#allocation5], 1
    %s1116 = scalar_lea.sflag [#allocation5], 1
    %1117 = vsyncpa %s1116, 1

</llo_original>
